<compile_context>
chip_gen: v7x
topology: tpu7x:2x2x1
jax: 0.10.0
libtpu: 0.0.40
codegen_flags: <defaults>
</compile_context>

<pallas_src>
import jax
import jax.numpy as jnp
from jax.experimental import pallas as pl
from jax.experimental.pallas import tpu as pltpu


def make_mlp_kernel(num_layers, sub_tile, n_full, rem):
    """Kernel over one (C_in, block_s) slab of a single batch element."""

    def kernel(x_ref, *refs):
        # refs = (w0, b0, w1, b1, ..., w_{L-1}, b_{L-1}, out_ref)
        out_ref = refs[-1]

        # Load parameters once per grid step (VMEM -> vreg); they are tiny and
        # become loop-invariant operands of the sub-chunk loop below.
        ws = [refs[2 * i][...] for i in range(num_layers)]
        bs = [refs[2 * i + 1][...].astype(jnp.float32) for i in range(num_layers)]

        def apply_mlp(h):
            for i in range(num_layers):
                w, b = ws[i], bs[i]
                # MXU matmul, f32 accumulation; operands stay in param dtype
                # (bf16 params => bf16 MXU passes on v5e/v6e/v7x).
                h = jnp.dot(w, h.astype(w.dtype),
                            preferred_element_type=jnp.float32) + b
                if i < num_layers - 1:          # ReLU on hidden layers only
                    h = jnp.maximum(h, 0.0)
            return h

        def process(start, width):
            h = apply_mlp(x_ref[:, pl.ds(start, width)])
            out_ref[:, pl.ds(start, width)] = h.astype(out_ref.dtype)

        # Uniform sub-chunks: fori_loop bounds live ranges (no unrolled spill
        # pressure) and keeps each h vreg-resident for exactly one chunk.
        if n_full == 1:
            process(0, sub_tile)
        elif n_full > 1:
            def body(j, carry):
                start = pl.multiple_of(j * sub_tile, sub_tile)
                process(start, sub_tile)
                return carry
            jax.lax.fori_loop(0, n_full, body, 0)
        # Static ragged tail (only when the whole block is a single small slab).
        if rem > 0:
            process(n_full * sub_tile, rem)

    return kernel


def channel_mlp_layer(x, weights, biases, *, sub_tile=512, block_lanes=8192):
    """x: (B, C_in, S); weights[i]: (C_next, C_prev) (PyTorch layout);
    biases[i]: (C_next, 1).  Returns (B, C_out, S)."""
    B, c_in, S = x.shape
    c_out = weights[-1].shape[0]
    L = len(weights)

    widths = [c_in] + [w.shape[0] for w in weights]
    max_w = max(widths)

    # --- sub-chunk width bounded by vreg pressure, multiple of 128 lanes ---
    vreg_bound = ((128 * 1024) // (4 * max_w)) // 128 * 128
    ts = max(128, min(sub_tile, max(128, vreg_bound)))

    # --- fat DMA block along S to amortize per-grid-step overhead ---------
    if S <= block_lanes:
        block_s, grid_s = S, 1                      # full extent: always legal
    else:
        block_s = max(ts, (block_lanes // ts) * ts)  # multiple of 128
        grid_s = pl.cdiv(S, block_s)                 # ragged last block OK

    n_full, rem = divmod(block_s, ts)

    kernel = make_mlp_kernel(L, ts, n_full, rem)

    flat_params = []
    for w, b in zip(weights, biases):
        flat_params.extend([w, b])

    # Advisory cost estimate so XLA can schedule around the custom call.
    flops = 2 * B * S * sum(widths[i] * widths[i + 1] for i in range(L))
    param_bytes = sum(int(p.size) * p.dtype.itemsize for p in flat_params)
    bytes_accessed = (int(x.size) * x.dtype.itemsize
                      + B * c_out * S * x.dtype.itemsize
                      + param_bytes)

    # Explicit VMEM budget: double-buffered activation tiles + resident params
    # (+ compute headroom), floored at 32 MiB, capped at 64 MiB (safe on v7x).
    act_bytes = 2 * 2 * (c_in + c_out) * block_s * x.dtype.itemsize
    scratch_bytes = 4 * max_w * ts * 4
    vmem_limit = int(min(64 << 20,
                         max(32 << 20,
                             2 * (act_bytes + 2 * param_bytes + scratch_bytes))))

    def build(single_buffer_params):
        pm = {}
        if single_buffer_params:
            # Constant-index parameter blocks don't need double buffering.
            pm = dict(pipeline_mode=pl.Buffered(1))
        in_specs = [pl.BlockSpec((None, c_in, block_s), lambda b, s: (b, 0, s))]
        for w, bias in zip(weights, biases):
            in_specs.append(pl.BlockSpec(w.shape, lambda b, s: (0, 0), **pm))
            in_specs.append(pl.BlockSpec(bias.shape, lambda b, s: (0, 0), **pm))
        return pl.pallas_call(
            kernel,
            out_shape=jax.ShapeDtypeStruct((B, c_out, S), x.dtype),
            grid=(B, grid_s),
            in_specs=in_specs,
            out_specs=pl.BlockSpec((None, c_out, block_s), lambda b, s: (b, 0, s)),
            compiler_params=pltpu.CompilerParams(
                dimension_semantics=("parallel", "parallel"),
                vmem_limit_bytes=vmem_limit),
            cost_estimate=pl.CostEstimate(flops=flops, transcendentals=0,
                                          bytes_accessed=bytes_accessed),
        )

    try:
        out = build(True)(x, *flat_params)
    except Exception:
        # Fallback if this Pallas build rejects single-buffered specs;
        # semantics are identical, only parameter VMEM residency doubles.
        out = build(False)(x, *flat_params)
    return out


def init_params(key, in_channels, out_channels, hidden_channels_list,
                dtype=jnp.float32):
    """nn.Linear-style init (uniform +/- 1/sqrt(fan_in)); weights stored
    (fan_out, fan_in) exactly like PyTorch; biases stored (fan_out, 1).
    Pass dtype=jnp.bfloat16 for MXU-native weights in production."""
    dims = [in_channels] + list(hidden_channels_list) + [out_channels]
    weights, biases = [], []
    for i in range(len(dims) - 1):
        fan_in, fan_out = dims[i], dims[i + 1]
        key, kw, kb = jax.random.split(key, 3)
        bound = 1.0 / jnp.sqrt(fan_in)
        w = jax.random.uniform(kw, (fan_out, fan_in), jnp.float32, -bound, bound)
        b = jax.random.uniform(kb, (fan_out, 1), jnp.float32, -bound, bound)
        weights.append(w.astype(dtype))
        biases.append(b.astype(dtype))
    return weights, biases


def reference(x, weights, biases):
    """Pure-JAX replica of the PyTorch forward (permute -> Linear/ReLU -> permute)."""
    h = jnp.transpose(x, (0, 2, 1))                     # (B, S, C_in)
    L = len(weights)
    for i in range(L):
        h = h @ weights[i].T.astype(jnp.float32) + biases[i][:, 0].astype(jnp.float32)
        if i < L - 1:
            h = jnp.maximum(h, 0.0)
    return jnp.transpose(h, (0, 2, 1)).astype(x.dtype)  # (B, C_out, S)


if __name__ == "__main__":
    key = jax.random.PRNGKey(0)
    B, C_IN, S = 2, 4, 16
    HIDDEN = [32, 32]
    C_OUT = 8

    key, kx, kp = jax.random.split(key, 3)
    x = jax.random.normal(kx, (B, C_IN, S), dtype=jnp.float32)
    weights, biases = init_params(kp, C_IN, C_OUT, HIDDEN)

    y = channel_mlp_layer(x, weights, biases)
    y = jax.block_until_ready(y)

    y_ref = reference(x, weights, biases)
    assert y.shape == (B, C_OUT, S), y.shape
    assert jnp.allclose(y, y_ref, atol=1e-5, rtol=1e-5), "mismatch vs reference"

    print("KERNEL_OK")
</pallas_src>

<mosaic_0001>
module attributes {stable_mosaic.version = 11 : i64} {
  func.func @kernel(%arg0: i32, %arg1: i32, %arg2: memref<1x4x16xf32, #tpu.memory_space<vmem>>, %arg3: memref<32x4xf32, #tpu.memory_space<vmem>>, %arg4: memref<32x1xf32, #tpu.memory_space<vmem>>, %arg5: memref<32x32xf32, #tpu.memory_space<vmem>>, %arg6: memref<32x1xf32, #tpu.memory_space<vmem>>, %arg7: memref<8x32xf32, #tpu.memory_space<vmem>>, %arg8: memref<8x1xf32, #tpu.memory_space<vmem>>, %arg9: memref<1x8x16xf32, #tpu.memory_space<vmem>>) attributes {dimension_semantics = [#tpu.dimension_semantics<parallel>, #tpu.dimension_semantics<parallel>], iteration_bounds = array<i64: 2, 1>, scalar_prefetch = 0 : i64, scratch_operands = 0 : i64, tpu.core_type = #tpu.core_type<tc>, window_params = [{transform_indices = @transform_0, window_bounds = array<i64: 1, 4, 16>}, {pipeline_mode = #tpu.pipeline_mode<synchronous>, transform_indices = @transform_1, window_bounds = array<i64: 32, 4>}, {pipeline_mode = #tpu.pipeline_mode<synchronous>, transform_indices = @transform_2, window_bounds = array<i64: 32, 1>}, {pipeline_mode = #tpu.pipeline_mode<synchronous>, transform_indices = @transform_3, window_bounds = array<i64: 32, 32>}, {pipeline_mode = #tpu.pipeline_mode<synchronous>, transform_indices = @transform_4, window_bounds = array<i64: 32, 1>}, {pipeline_mode = #tpu.pipeline_mode<synchronous>, transform_indices = @transform_5, window_bounds = array<i64: 8, 32>}, {pipeline_mode = #tpu.pipeline_mode<synchronous>, transform_indices = @transform_6, window_bounds = array<i64: 8, 1>}, {transform_indices = @transform_7, window_bounds = array<i64: 1, 8, 16>}]} {
    %c0 = arith.constant 0 : index
    %c0_0 = arith.constant 0 : index
    %0 = vector.load %arg3[%c0, %c0_0] : memref<32x4xf32, #tpu.memory_space<vmem>>, vector<32x4xf32>
    %c0_1 = arith.constant 0 : index
    %c0_2 = arith.constant 0 : index
    %1 = vector.load %arg5[%c0_1, %c0_2] : memref<32x32xf32, #tpu.memory_space<vmem>>, vector<32x32xf32>
    %c0_3 = arith.constant 0 : index
    %c0_4 = arith.constant 0 : index
    %2 = vector.load %arg7[%c0_3, %c0_4] : memref<8x32xf32, #tpu.memory_space<vmem>>, vector<8x32xf32>
    %c0_5 = arith.constant 0 : index
    %c0_6 = arith.constant 0 : index
    %3 = vector.load %arg4[%c0_5, %c0_6] : memref<32x1xf32, #tpu.memory_space<vmem>>, vector<32x1xf32>
    %c0_7 = arith.constant 0 : index
    %c0_8 = arith.constant 0 : index
    %4 = vector.load %arg6[%c0_7, %c0_8] : memref<32x1xf32, #tpu.memory_space<vmem>>, vector<32x1xf32>
    %c0_9 = arith.constant 0 : index
    %c0_10 = arith.constant 0 : index
    %5 = vector.load %arg8[%c0_9, %c0_10] : memref<8x1xf32, #tpu.memory_space<vmem>>, vector<8x1xf32>
    %c0_11 = arith.constant 0 : index
    %c0_12 = arith.constant 0 : index
    %c0_13 = arith.constant 0 : index
    %6 = vector.load %arg2[%c0_11, %c0_12, %c0_13] : memref<1x4x16xf32, #tpu.memory_space<vmem>>, vector<1x4x16xf32>
    %7 = vector.shape_cast %6 : vector<1x4x16xf32> to vector<4x16xf32>
    %cst = arith.constant dense<0.000000e+00> : vector<32x16xf32>
    %8 = tpu.matmul %0, %7, %cst {dimension_numbers = #tpu.dot_dimension_numbers<[1], [0], [0], [1], [0, 0, 1, 1], [], []>} : vector<32x4xf32>, vector<4x16xf32>, vector<32x16xf32> -> vector<32x16xf32>
    %9 = vector.broadcast %3 : vector<32x1xf32> to vector<32x16xf32>
    %10 = arith.addf %8, %9 : vector<32x16xf32>
    %cst_14 = arith.constant 0.000000e+00 : f32
    %11 = vector.broadcast %cst_14 : f32 to vector<32x16xf32>
    %12 = arith.maximumf %10, %11 : vector<32x16xf32>
    %cst_15 = arith.constant dense<0.000000e+00> : vector<32x16xf32>
    %13 = tpu.matmul %1, %12, %cst_15 {dimension_numbers = #tpu.dot_dimension_numbers<[1], [0], [0], [1], [0, 0, 1, 1], [], []>} : vector<32x32xf32>, vector<32x16xf32>, vector<32x16xf32> -> vector<32x16xf32>
    %14 = vector.broadcast %4 : vector<32x1xf32> to vector<32x16xf32>
    %15 = arith.addf %13, %14 : vector<32x16xf32>
    %cst_16 = arith.constant 0.000000e+00 : f32
    %16 = vector.broadcast %cst_16 : f32 to vector<32x16xf32>
    %17 = arith.maximumf %15, %16 : vector<32x16xf32>
    %cst_17 = arith.constant dense<0.000000e+00> : vector<8x16xf32>
    %18 = tpu.matmul %2, %17, %cst_17 {dimension_numbers = #tpu.dot_dimension_numbers<[1], [0], [0], [1], [0, 0, 1, 1], [], []>} : vector<8x32xf32>, vector<32x16xf32>, vector<8x16xf32> -> vector<8x16xf32>
    %19 = vector.broadcast %5 : vector<8x1xf32> to vector<8x16xf32>
    %20 = arith.addf %18, %19 : vector<8x16xf32>
    %c0_18 = arith.constant 0 : index
    %c0_19 = arith.constant 0 : index
    %c0_20 = arith.constant 0 : index
    %21 = vector.load %arg9[%c0_18, %c0_19, %c0_20] : memref<1x8x16xf32, #tpu.memory_space<vmem>>, vector<1x8x16xf32>
    %22 = vector.shape_cast %21 : vector<1x8x16xf32> to vector<8x16xf32>
    %23 = vector.shape_cast %20 : vector<8x16xf32> to vector<1x8x16xf32>
    tpu.vector_store %arg9[%c0_18, %c0_19, %c0_20], %23 {strides = array<i32>} : memref<1x8x16xf32, #tpu.memory_space<vmem>>, vector<1x8x16xf32>,
    return
  }
  func.func @transform_0(%arg0: i32, %arg1: i32) -> (i32, i32, i32) {
    %c0_i32 = arith.constant 0 : i32
    %c0_i32_0 = arith.constant 0 : i32
    return %arg0, %c0_i32, %arg1 : i32, i32, i32
  }
  func.func @transform_1(%arg0: i32, %arg1: i32) -> (i32, i32) {
    %c0_i32 = arith.constant 0 : i32
    %c0_i32_0 = arith.constant 0 : i32
    %c0_i32_1 = arith.constant 0 : i32
    return %c0_i32, %c0_i32_0 : i32, i32
  }
  func.func @transform_2(%arg0: i32, %arg1: i32) -> (i32, i32) {
    %c0_i32 = arith.constant 0 : i32
    %c0_i32_0 = arith.constant 0 : i32
    %c0_i32_1 = arith.constant 0 : i32
    return %c0_i32, %c0_i32_0 : i32, i32
  }
  func.func @transform_3(%arg0: i32, %arg1: i32) -> (i32, i32) {
    %c0_i32 = arith.constant 0 : i32
    %c0_i32_0 = arith.constant 0 : i32
    %c0_i32_1 = arith.constant 0 : i32
    return %c0_i32, %c0_i32_0 : i32, i32
  }
  func.func @transform_4(%arg0: i32, %arg1: i32) -> (i32, i32) {
    %c0_i32 = arith.constant 0 : i32
    %c0_i32_0 = arith.constant 0 : i32
    %c0_i32_1 = arith.constant 0 : i32
    return %c0_i32, %c0_i32_0 : i32, i32
  }
  func.func @transform_5(%arg0: i32, %arg1: i32) -> (i32, i32) {
    %c0_i32 = arith.constant 0 : i32
    %c0_i32_0 = arith.constant 0 : i32
    %c0_i32_1 = arith.constant 0 : i32
    return %c0_i32, %c0_i32_0 : i32, i32
  }
  func.func @transform_6(%arg0: i32, %arg1: i32) -> (i32, i32) {
    %c0_i32 = arith.constant 0 : i32
    %c0_i32_0 = arith.constant 0 : i32
    %c0_i32_1 = arith.constant 0 : i32
    return %c0_i32, %c0_i32_0 : i32, i32
  }
  func.func @transform_7(%arg0: i32, %arg1: i32) -> (i32, i32, i32) {
    %c0_i32 = arith.constant 0 : i32
    %c0_i32_0 = arith.constant 0 : i32
    return %arg0, %c0_i32, %arg1 : i32, i32, i32
  }
}

module attributes {stable_mosaic.version = 11 : i64} {
  func.func @kernel(%arg0: i32, %arg1: i32, %arg2: memref<1x4x16xf32, #tpu.memory_space<vmem>>, %arg3: memref<32x4xf32, #tpu.memory_space<vmem>>, %arg4: memref<32x1xf32, #tpu.memory_space<vmem>>, %arg5: memref<32x32xf32, #tpu.memory_space<vmem>>, %arg6: memref<32x1xf32, #tpu.memory_space<vmem>>, %arg7: memref<8x32xf32, #tpu.memory_space<vmem>>, %arg8: memref<8x1xf32, #tpu.memory_space<vmem>>, %arg9: memref<1x8x16xf32, #tpu.memory_space<vmem>>) attributes {dimension_semantics = [#tpu.dimension_semantics<parallel>, #tpu.dimension_semantics<parallel>], iteration_bounds = array<i64: 2, 1>, scalar_prefetch = 0 : i64, scratch_operands = 0 : i64, tpu.core_type = #tpu.core_type<tc>, window_params = [{transform_indices = @transform_0, window_bounds = array<i64: 1, 4, 16>}, {pipeline_mode = #tpu.pipeline_mode<synchronous>, transform_indices = @transform_1, window_bounds = array<i64: 32, 4>}, {pipeline_mode = #tpu.pipeline_mode<synchronous>, transform_indices = @transform_2, window_bounds = array<i64: 32, 1>}, {pipeline_mode = #tpu.pipeline_mode<synchronous>, transform_indices = @transform_3, window_bounds = array<i64: 32, 32>}, {pipeline_mode = #tpu.pipeline_mode<synchronous>, transform_indices = @transform_4, window_bounds = array<i64: 32, 1>}, {pipeline_mode = #tpu.pipeline_mode<synchronous>, transform_indices = @transform_5, window_bounds = array<i64: 8, 32>}, {pipeline_mode = #tpu.pipeline_mode<synchronous>, transform_indices = @transform_6, window_bounds = array<i64: 8, 1>}, {transform_indices = @transform_7, window_bounds = array<i64: 1, 8, 16>}]} {
    %c0 = arith.constant 0 : index
    %c0_0 = arith.constant 0 : index
    %0 = vector.load %arg3[%c0, %c0_0] : memref<32x4xf32, #tpu.memory_space<vmem>>, vector<32x4xf32>
    %c0_1 = arith.constant 0 : index
    %c0_2 = arith.constant 0 : index
    %1 = vector.load %arg5[%c0_1, %c0_2] : memref<32x32xf32, #tpu.memory_space<vmem>>, vector<32x32xf32>
    %c0_3 = arith.constant 0 : index
    %c0_4 = arith.constant 0 : index
    %2 = vector.load %arg7[%c0_3, %c0_4] : memref<8x32xf32, #tpu.memory_space<vmem>>, vector<8x32xf32>
    %c0_5 = arith.constant 0 : index
    %c0_6 = arith.constant 0 : index
    %3 = vector.load %arg4[%c0_5, %c0_6] : memref<32x1xf32, #tpu.memory_space<vmem>>, vector<32x1xf32>
    %c0_7 = arith.constant 0 : index
    %c0_8 = arith.constant 0 : index
    %4 = vector.load %arg6[%c0_7, %c0_8] : memref<32x1xf32, #tpu.memory_space<vmem>>, vector<32x1xf32>
    %c0_9 = arith.constant 0 : index
    %c0_10 = arith.constant 0 : index
    %5 = vector.load %arg8[%c0_9, %c0_10] : memref<8x1xf32, #tpu.memory_space<vmem>>, vector<8x1xf32>
    %c0_11 = arith.constant 0 : index
    %c0_12 = arith.constant 0 : index
    %c0_13 = arith.constant 0 : index
    %6 = vector.load %arg2[%c0_11, %c0_12, %c0_13] : memref<1x4x16xf32, #tpu.memory_space<vmem>>, vector<1x4x16xf32>
    %7 = vector.shape_cast %6 : vector<1x4x16xf32> to vector<4x16xf32>
    %cst = arith.constant dense<0.000000e+00> : vector<32x16xf32>
    %8 = tpu.matmul %0, %7, %cst {dimension_numbers = #tpu.dot_dimension_numbers<[1], [0], [0], [1], [0, 0, 1, 1], [], []>} : vector<32x4xf32>, vector<4x16xf32>, vector<32x16xf32> -> vector<32x16xf32>
    %9 = vector.broadcast %3 : vector<32x1xf32> to vector<32x16xf32>
    %10 = arith.addf %8, %9 : vector<32x16xf32>
    %cst_14 = arith.constant 0.000000e+00 : f32
    %11 = vector.broadcast %cst_14 : f32 to vector<32x16xf32>
    %12 = arith.maximumf %10, %11 : vector<32x16xf32>
    %cst_15 = arith.constant dense<0.000000e+00> : vector<32x16xf32>
    %13 = tpu.matmul %1, %12, %cst_15 {dimension_numbers = #tpu.dot_dimension_numbers<[1], [0], [0], [1], [0, 0, 1, 1], [], []>} : vector<32x32xf32>, vector<32x16xf32>, vector<32x16xf32> -> vector<32x16xf32>
    %14 = vector.broadcast %4 : vector<32x1xf32> to vector<32x16xf32>
    %15 = arith.addf %13, %14 : vector<32x16xf32>
    %cst_16 = arith.constant 0.000000e+00 : f32
    %16 = vector.broadcast %cst_16 : f32 to vector<32x16xf32>
    %17 = arith.maximumf %15, %16 : vector<32x16xf32>
    %cst_17 = arith.constant dense<0.000000e+00> : vector<8x16xf32>
    %18 = tpu.matmul %2, %17, %cst_17 {dimension_numbers = #tpu.dot_dimension_numbers<[1], [0], [0], [1], [0, 0, 1, 1], [], []>} : vector<8x32xf32>, vector<32x16xf32>, vector<8x16xf32> -> vector<8x16xf32>
    %19 = vector.broadcast %5 : vector<8x1xf32> to vector<8x16xf32>
    %20 = arith.addf %18, %19 : vector<8x16xf32>
    %c0_18 = arith.constant 0 : index
    %c0_19 = arith.constant 0 : index
    %c0_20 = arith.constant 0 : index
    %21 = vector.load %arg9[%c0_18, %c0_19, %c0_20] : memref<1x8x16xf32, #tpu.memory_space<vmem>>, vector<1x8x16xf32>
    %22 = vector.shape_cast %21 : vector<1x8x16xf32> to vector<8x16xf32>
    %23 = vector.shape_cast %20 : vector<8x16xf32> to vector<1x8x16xf32>
    tpu.vector_store %arg9[%c0_18, %c0_19, %c0_20], %23 {strides = array<i32>} : memref<1x8x16xf32, #tpu.memory_space<vmem>>, vector<1x8x16xf32>,
    return
  }
  func.func @transform_0(%arg0: i32, %arg1: i32) -> (i32, i32, i32) {
    %c0_i32 = arith.constant 0 : i32
    %c0_i32_0 = arith.constant 0 : i32
    return %arg0, %c0_i32, %arg1 : i32, i32, i32
  }
  func.func @transform_1(%arg0: i32, %arg1: i32) -> (i32, i32) {
    %c0_i32 = arith.constant 0 : i32
    %c0_i32_0 = arith.constant 0 : i32
    %c0_i32_1 = arith.constant 0 : i32
    return %c0_i32, %c0_i32_0 : i32, i32
  }
  func.func @transform_2(%arg0: i32, %arg1: i32) -> (i32, i32) {
    %c0_i32 = arith.constant 0 : i32
    %c0_i32_0 = arith.constant 0 : i32
    %c0_i32_1 = arith.constant 0 : i32
    return %c0_i32, %c0_i32_0 : i32, i32
  }
  func.func @transform_3(%arg0: i32, %arg1: i32) -> (i32, i32) {
    %c0_i32 = arith.constant 0 : i32
    %c0_i32_0 = arith.constant 0 : i32
    %c0_i32_1 = arith.constant 0 : i32
    return %c0_i32, %c0_i32_0 : i32, i32
  }
  func.func @transform_4(%arg0: i32, %arg1: i32) -> (i32, i32) {
    %c0_i32 = arith.constant 0 : i32
    %c0_i32_0 = arith.constant 0 : i32
    %c0_i32_1 = arith.constant 0 : i32
    return %c0_i32, %c0_i32_0 : i32, i32
  }
  func.func @transform_5(%arg0: i32, %arg1: i32) -> (i32, i32) {
    %c0_i32 = arith.constant 0 : i32
    %c0_i32_0 = arith.constant 0 : i32
    %c0_i32_1 = arith.constant 0 : i32
    return %c0_i32, %c0_i32_0 : i32, i32
  }
  func.func @transform_6(%arg0: i32, %arg1: i32) -> (i32, i32) {
    %c0_i32 = arith.constant 0 : i32
    %c0_i32_0 = arith.constant 0 : i32
    %c0_i32_1 = arith.constant 0 : i32
    return %c0_i32, %c0_i32_0 : i32, i32
  }
  func.func @transform_7(%arg0: i32, %arg1: i32) -> (i32, i32, i32) {
    %c0_i32 = arith.constant 0 : i32
    %c0_i32_0 = arith.constant 0 : i32
    return %arg0, %c0_i32, %arg1 : i32, i32, i32
  }
}

</mosaic_0001>

<llo_original>
// kernel: tpu_custom_call.1
$region0: #{tpu_custom_call.1}
  #allocation0 [shape = 'u32[]', space=smem, size = 0x4, offset = 0x4, fixed_abs, tag = 'smem constant byte address 0x4 - core index']
  #allocation1 [shape = 'u32[144,128]{1,0:T(1,128)}', space=vmem, size = 0x12000, scoped, tag = 'internal scratch']
  %s0 = inlined_call_operand.vmem [shape: f32[2,4,16], index: 0, kind: input, shape index: {}]
  %s1 = inlined_call_operand.vmem [shape: f32[32,4], index: 1, kind: input, shape index: {}]
  %s2 = inlined_call_operand.vmem [shape: f32[32,1], index: 2, kind: input, shape index: {}]
  %s3 = inlined_call_operand.vmem [shape: f32[32,32], index: 3, kind: input, shape index: {}]
  %s4 = inlined_call_operand.vmem [shape: f32[32,1], index: 4, kind: input, shape index: {}]
  %s5 = inlined_call_operand.vmem [shape: f32[8,32], index: 5, kind: input, shape index: {}]
  %s6 = inlined_call_operand.vmem [shape: f32[8,1], index: 6, kind: input, shape index: {}]
  %s7 = inlined_call_operand.hbm [shape: f32[2,8,16], index: 7, kind: output, shape index: {}]
  %s8 = sld [smem:[#allocation0]]
  $region61: #{tpu_custom_call.1} parent=0
    _
  %s10 = ssub.s32 1, %s8
  %s11 = scalar_select 0, %s10, %s8
  $region1: #{tpu_custom_call.1} parent=0
    #allocation2 [shape = 'u8[8192]{0}', space=vmem, size = 0x2000, scoped, tag = 'output window, operand 0']
    #allocation3 [shape = 's32[2]{0}', space=sflag, size = 0x8, scoped, tag = 'scoped memory for tpu_custom_call.1']
    %12 = vsyncpa [#allocation3], 0
    %s13 = scalar_lea.sflag [#allocation3], 1
    %14 = vsyncpa %s13, 0
    loop: start=0, step=1, limit=4
    $region2: #{tpu_custom_call.1} parent=1 // loop_pre_header
      _
    $region3: #{tpu_custom_call.1} parent=1 // loop_header
      %s16 = sphi 0, %s20
      %p17 = scmp.ge.s32.totalorder %s16, 4
      %s23 = sphi 0, %s35
      %s24 = sphi 0, %s31
      %s25 = sphi 0, %s23
      %s26 = sphi 0, %s24
      %s27 = sphi 0, %s25
      %s28 = sphi 0, %s26
      %s40 = sphi 0, %s42
      %s43 = sphi 0, %s40
      %s44 = sphi 0, %s43
      %s60 = sphi 0, %s44
      %s64 = sphi 0, %s64
      %s66 = sphi 0, %s64
      %s67 = sphi 0, %s66
      %s81 = sphi 0, %s67
      %s85 = sphi 0, %s85
      %s87 = sphi 0, %s85
      %s88 = sphi 0, %s87
      %s102 = sphi 0, %s88
      %s106 = sphi 0, %s106
      %s108 = sphi 0, %s106
      %s109 = sphi 0, %s108
      %s123 = sphi 0, %s109
      %s127 = sphi 0, %s127
      %s129 = sphi 0, %s127
      %s130 = sphi 0, %s129
      %s144 = sphi 0, %s130
      %s148 = sphi 0, %s148
      %s150 = sphi 0, %s148
      %s151 = sphi 0, %s150
      %s165 = sphi 0, %s151
      %s169 = sphi 0, %s169
      %s171 = sphi 0, %s169
      %s172 = sphi 0, %s171
      %s186 = sphi 0, %s172
      %s194 = sphi 0, %s196
      %s197 = sphi 0, %s194
      %s198 = sphi 0, %s197
      %s214 = sphi 0, %s198
    $region4: #{tpu_custom_call.1} parent=1 // loop_header_branch
      %19 = sbr.rel (%p17) target = $region8
    $region5: #{tpu_custom_call.1} parent=1 // loop_body
      %s21 = ssub.s32 %s16, 1
      %s22 = ssub.s32 %s16, 2
      %s29 = sadd.s32 1, %s24
      %p30 = scmp.ge.s32.totalorder %s29, 1
      %s31 = scalar_select %p30, 0, %s29
      %s32 = sadd.s32 1, %s23
      %s33 = scalar_select %p30, %s32, %s23
      %p34 = scmp.ge.s32.totalorder %s33, 2
      %s35 = scalar_select %p34, 0, %s33
      %s36 = ssub.s32 %s23, %s35
      %s37 = ssub.s32 %s24, %s31
      %s38 = sor.u32 %s36, %s37
      %p39 = scmp.eq.s32.totalorder %s38, 0
      %s41 = sadd.s32 %s40, 1
      %s42 = scalar_select %p39, %s40, %s41
      %p45 = pneg %p39
      %p46 = scmp.eq.s32.totalorder %s16, 1
      %p47 = por %p45, %p46
      %p48 = scmp.ne.s32.totalorder %s40, %s43
      %p49 = scmp.eq.s32.totalorder %s16, 0
      %p50 = por %p48, %p49
      %p51 = scmp.ne.s32.totalorder %s40, %s43
      %p52 = scmp.eq.s32.totalorder %s21, 1
      %p53 = por %p51, %p52
      %p54 = scmp.ne.s32.totalorder %s43, %s44
      %p55 = scmp.eq.s32.totalorder %s21, 0
      %p56 = por %p54, %p55
      %p57 = scmp.ne.s32.totalorder %s43, %s44
      %p58 = scmp.eq.s32.totalorder %s22, 1
      %p59 = por %p57, %p58
      %p61 = scmp.ne.s32.totalorder %s44, %s60
      %p62 = scmp.eq.s32.totalorder %s22, 0
      %p63 = por %p61, %p62
      %s65 = sadd.s32 %s64, 1
      %p68 = scmp.eq.s32.totalorder %s16, 1
      %p69 = scmp.ne.s32.totalorder %s64, %s66
      %p70 = scmp.eq.s32.totalorder %s16, 0
      %p71 = por %p69, %p70
      %p72 = scmp.ne.s32.totalorder %s64, %s66
      %p73 = scmp.eq.s32.totalorder %s21, 1
      %p74 = por %p72, %p73
      %p75 = scmp.ne.s32.totalorder %s66, %s67
      %p76 = scmp.eq.s32.totalorder %s21, 0
      %p77 = por %p75, %p76
      %p78 = scmp.ne.s32.totalorder %s66, %s67
      %p79 = scmp.eq.s32.totalorder %s22, 1
      %p80 = por %p78, %p79
      %p82 = scmp.ne.s32.totalorder %s67, %s81
      %p83 = scmp.eq.s32.totalorder %s22, 0
      %p84 = por %p82, %p83
      %s86 = sadd.s32 %s85, 1
      %p89 = scmp.eq.s32.totalorder %s16, 1
      %p90 = scmp.ne.s32.totalorder %s85, %s87
      %p91 = scmp.eq.s32.totalorder %s16, 0
      %p92 = por %p90, %p91
      %p93 = scmp.ne.s32.totalorder %s85, %s87
      %p94 = scmp.eq.s32.totalorder %s21, 1
      %p95 = por %p93, %p94
      %p96 = scmp.ne.s32.totalorder %s87, %s88
      %p97 = scmp.eq.s32.totalorder %s21, 0
      %p98 = por %p96, %p97
      %p99 = scmp.ne.s32.totalorder %s87, %s88
      %p100 = scmp.eq.s32.totalorder %s22, 1
      %p101 = por %p99, %p100
      %p103 = scmp.ne.s32.totalorder %s88, %s102
      %p104 = scmp.eq.s32.totalorder %s22, 0
      %p105 = por %p103, %p104
      %s107 = sadd.s32 %s106, 1
      %p110 = scmp.eq.s32.totalorder %s16, 1
      %p111 = scmp.ne.s32.totalorder %s106, %s108
      %p112 = scmp.eq.s32.totalorder %s16, 0
      %p113 = por %p111, %p112
      %p114 = scmp.ne.s32.totalorder %s106, %s108
      %p115 = scmp.eq.s32.totalorder %s21, 1
      %p116 = por %p114, %p115
      %p117 = scmp.ne.s32.totalorder %s108, %s109
      %p118 = scmp.eq.s32.totalorder %s21, 0
      %p119 = por %p117, %p118
      %p120 = scmp.ne.s32.totalorder %s108, %s109
      %p121 = scmp.eq.s32.totalorder %s22, 1
      %p122 = por %p120, %p121
      %p124 = scmp.ne.s32.totalorder %s109, %s123
      %p125 = scmp.eq.s32.totalorder %s22, 0
      %p126 = por %p124, %p125
      %s128 = sadd.s32 %s127, 1
      %p131 = scmp.eq.s32.totalorder %s16, 1
      %p132 = scmp.ne.s32.totalorder %s127, %s129
      %p133 = scmp.eq.s32.totalorder %s16, 0
      %p134 = por %p132, %p133
      %p135 = scmp.ne.s32.totalorder %s127, %s129
      %p136 = scmp.eq.s32.totalorder %s21, 1
      %p137 = por %p135, %p136
      %p138 = scmp.ne.s32.totalorder %s129, %s130
      %p139 = scmp.eq.s32.totalorder %s21, 0
      %p140 = por %p138, %p139
      %p141 = scmp.ne.s32.totalorder %s129, %s130
      %p142 = scmp.eq.s32.totalorder %s22, 1
      %p143 = por %p141, %p142
      %p145 = scmp.ne.s32.totalorder %s130, %s144
      %p146 = scmp.eq.s32.totalorder %s22, 0
      %p147 = por %p145, %p146
      %s149 = sadd.s32 %s148, 1
      %p152 = scmp.eq.s32.totalorder %s16, 1
      %p153 = scmp.ne.s32.totalorder %s148, %s150
      %p154 = scmp.eq.s32.totalorder %s16, 0
      %p155 = por %p153, %p154
      %p156 = scmp.ne.s32.totalorder %s148, %s150
      %p157 = scmp.eq.s32.totalorder %s21, 1
      %p158 = por %p156, %p157
      %p159 = scmp.ne.s32.totalorder %s150, %s151
      %p160 = scmp.eq.s32.totalorder %s21, 0
      %p161 = por %p159, %p160
      %p162 = scmp.ne.s32.totalorder %s150, %s151
      %p163 = scmp.eq.s32.totalorder %s22, 1
      %p164 = por %p162, %p163
      %p166 = scmp.ne.s32.totalorder %s151, %s165
      %p167 = scmp.eq.s32.totalorder %s22, 0
      %p168 = por %p166, %p167
      %s170 = sadd.s32 %s169, 1
      %p173 = scmp.eq.s32.totalorder %s16, 1
      %p174 = scmp.ne.s32.totalorder %s169, %s171
      %p175 = scmp.eq.s32.totalorder %s16, 0
      %p176 = por %p174, %p175
      %p177 = scmp.ne.s32.totalorder %s169, %s171
      %p178 = scmp.eq.s32.totalorder %s21, 1
      %p179 = por %p177, %p178
      %p180 = scmp.ne.s32.totalorder %s171, %s172
      %p181 = scmp.eq.s32.totalorder %s21, 0
      %p182 = por %p180, %p181
      %p183 = scmp.ne.s32.totalorder %s171, %s172
      %p184 = scmp.eq.s32.totalorder %s22, 1
      %p185 = por %p183, %p184
      %p187 = scmp.ne.s32.totalorder %s172, %s186
      %p188 = scmp.eq.s32.totalorder %s22, 0
      %p189 = por %p187, %p188
      %s190 = ssub.s32 %s23, %s35
      %s191 = ssub.s32 %s24, %s31
      %s192 = sor.u32 %s190, %s191
      %p193 = scmp.eq.s32.totalorder %s192, 0
      %s195 = sadd.s32 %s194, 1
      %s196 = scalar_select %p193, %s194, %s195
      %p199 = pneg %p193
      %p200 = scmp.eq.s32.totalorder %s16, 1
      %p201 = por %p199, %p200
      %p202 = scmp.ne.s32.totalorder %s194, %s197
      %p203 = scmp.eq.s32.totalorder %s16, 0
      %p204 = por %p202, %p203
      %p205 = scmp.ne.s32.totalorder %s194, %s197
      %p206 = scmp.eq.s32.totalorder %s21, 1
      %p207 = por %p205, %p206
      %p208 = scmp.ne.s32.totalorder %s197, %s198
      %p209 = scmp.eq.s32.totalorder %s21, 0
      %p210 = por %p208, %p209
      %p211 = scmp.ne.s32.totalorder %s197, %s198
      %p212 = scmp.eq.s32.totalorder %s22, 1
      %p213 = por %p211, %p212
      %p215 = scmp.ne.s32.totalorder %s198, %s214
      %p216 = scmp.eq.s32.totalorder %s22, 0
      %p217 = por %p215, %p216
      %p218 = scmp.le.s32.totalorder 1, %s16
      %p219 = scmp.lt.s32.totalorder %s16, 3
      %p220 = pnand %p218, %p219
      %p221 = pneg %p220
      // Predicated region
      $region9: #{tpu_custom_call.1} parent=5 // pred_check
        _
      $region10: #{tpu_custom_call.1} parent=5 // pred_check_branch
        %223 = sbr.rel (%p220) target = $region12
      $region11: #{tpu_custom_call.1} parent=5 // pred_region
        %s224 = ssub.s32 %s16, 1
        // Predicated region
        $region13: #{tpu_custom_call.1} parent=11 // pred_check
          %p225 = pneg %p77
        $region14: #{tpu_custom_call.1} parent=11 // pred_check_branch
          %227 = sbr.rel (%p225) target = $region16
        $region15: #{tpu_custom_call.1} parent=11 // pred_region
          _
        $region16: #{tpu_custom_call.1} parent=11 // pred_fallthru
          _
        // Predicated region
        $region17: #{tpu_custom_call.1} parent=11 // pred_check
          %p228 = pneg %p98
        $region18: #{tpu_custom_call.1} parent=11 // pred_check_branch
          %230 = sbr.rel (%p228) target = $region20
        $region19: #{tpu_custom_call.1} parent=11 // pred_region
          _
        $region20: #{tpu_custom_call.1} parent=11 // pred_fallthru
          _
        // Predicated region
        $region21: #{tpu_custom_call.1} parent=11 // pred_check
          %p231 = pneg %p119
        $region22: #{tpu_custom_call.1} parent=11 // pred_check_branch
          %233 = sbr.rel (%p231) target = $region24
        $region23: #{tpu_custom_call.1} parent=11 // pred_region
          _
        $region24: #{tpu_custom_call.1} parent=11 // pred_fallthru
          _
        // Predicated region
        $region25: #{tpu_custom_call.1} parent=11 // pred_check
          %p234 = pneg %p140
        $region26: #{tpu_custom_call.1} parent=11 // pred_check_branch
          %236 = sbr.rel (%p234) target = $region28
        $region27: #{tpu_custom_call.1} parent=11 // pred_region
          _
        $region28: #{tpu_custom_call.1} parent=11 // pred_fallthru
          _
        // Predicated region
        $region29: #{tpu_custom_call.1} parent=11 // pred_check
          %p237 = pneg %p161
        $region30: #{tpu_custom_call.1} parent=11 // pred_check_branch
          %239 = sbr.rel (%p237) target = $region32
        $region31: #{tpu_custom_call.1} parent=11 // pred_region
          _
        $region32: #{tpu_custom_call.1} parent=11 // pred_fallthru
          _
        // Predicated region
        $region33: #{tpu_custom_call.1} parent=11 // pred_check
          %p240 = pneg %p182
        $region34: #{tpu_custom_call.1} parent=11 // pred_check_branch
          %242 = sbr.rel (%p240) target = $region36
        $region35: #{tpu_custom_call.1} parent=11 // pred_region
          _
        $region36: #{tpu_custom_call.1} parent=11 // pred_fallthru
          _
      $region12: #{tpu_custom_call.1} parent=5 // pred_fallthru
        _
      %p243 = scmp.lt.s32.totalorder %s16, 2
      // Predicated region
      $region37: #{tpu_custom_call.1} parent=5 // pred_check
        %p244 = pneg %p243
      $region38: #{tpu_custom_call.1} parent=5 // pred_check_branch
        %246 = sbr.rel (%p244) target = $region40
      $region39: #{tpu_custom_call.1} parent=5 // pred_region
        // Predicated region
        $region41: #{tpu_custom_call.1} parent=39 // pred_check
          %p247 = pneg %p50
        $region42: #{tpu_custom_call.1} parent=39 // pred_check_branch
          %249 = sbr.rel (%p247) target = $region44
        $region43: #{tpu_custom_call.1} parent=39 // pred_region
          %p250 = scmp.lt.s32.totalorder %s23, 1
          %s251 = scalar_select %p250, %s23, 1
          %p252 = scmp.lt.s32.totalorder %s24, 0
          %s253 = scalar_select %p252, %s24, 0
          %s254 = sadd.s32 %s253, %s251
          %s255 = smul.addr %s254, 4
          %s256 = scalar_lea.vmem %s0, %s255
        $region44: #{tpu_custom_call.1} parent=39 // pred_fallthru
          _
      $region40: #{tpu_custom_call.1} parent=5 // pred_fallthru
        _
      %p257 = scmp.le.s32.totalorder 1, %s16
      %p258 = scmp.lt.s32.totalorder %s16, 3
      %p259 = pnand %p257, %p258
      %p260 = pneg %p259
      // Predicated region
      $region45: #{tpu_custom_call.1} parent=5 // pred_check
        _
      $region46: #{tpu_custom_call.1} parent=5 // pred_check_branch
        %262 = sbr.rel (%p259) target = $region48
      $region47: #{tpu_custom_call.1} parent=5 // pred_region
        %s263 = ssub.s32 %s16, 1
        %p264 = scmp.lt.s32.totalorder %s25, 1
        %s265 = scalar_select %p264, %s25, 1
        %p266 = scmp.lt.s32.totalorder %s26, 0
        %s267 = scalar_select %p266, %s26, 0
        %s268 = sadd.s32 %s267, %s265
        %s269 = smul.addr %s268, 4
        %s270 = scalar_lea.vmem %s0, %s269
        %p271 = pneg %p56
        %p272 = pneg %p53
        %p273 = pneg %p77
        %p274 = pneg %p74
        %p275 = pneg %p98
        %p276 = pneg %p95
        %p277 = pneg %p119
        %p278 = pneg %p116
        %p279 = pneg %p140
        %p280 = pneg %p137
        %p281 = pneg %p161
        %p282 = pneg %p158
        %p283 = pneg %p182
        %p284 = pneg %p179
        %p285 = pneg %p210
        %p286 = pneg %p207
        %s287 = sand.u32 %s197, 1
        %s288 = scalar_lea.sflag [#allocation3], %s287
        %s289 = sand.u32 %s197, 1
        %s290 = smul.addr %s289, 8
        %s291 = scalar_lea.vmem [#allocation2], %s290
        %p292 = scmp.lt.s32.totalorder %s25, 1
        %s293 = scalar_select %p292, %s25, 1
        %p294 = scmp.lt.s32.totalorder %s26, 0
        %s295 = scalar_select %p294, %s26, 0
        %s296 = sadd.s32 %s295, %s293
        %s297 = smul.addr %s296, 4
        %s298 = scalar_lea.vmem %s0, %s297
        %v299 = vld [vmem:[%s1] sm:$0xff]
        %v300 = vld [vmem:[%s1 + $0x8] sm:$0xff]
        %v301 = vld [vmem:[%s1 + $0x10] sm:$0xff]
        %v302 = vld [vmem:[%s1 + $0x18] sm:$0xff]
        %v303 = vld [vmem:[%s3] sm:$0xff]
        %v304 = vld [vmem:[%s3 + $0x8] sm:$0xff]
        %v305 = vld [vmem:[%s3 + $0x10] sm:$0xff]
        %v306 = vld [vmem:[%s3 + $0x18] sm:$0xff]
        %v307 = vld [vmem:[%s5] sm:$0xff]
        %v308 = vld [vmem:[%s2] sm:$0xff]
        %v309 = vld [vmem:[%s2 + $0x8] sm:$0xff]
        %v310 = vld [vmem:[%s2 + $0x10] sm:$0xff]
        %v311 = vld [vmem:[%s2 + $0x18] sm:$0xff]
        %v312 = vld [vmem:[%s4] sm:$0xff]
        %v313 = vld [vmem:[%s4 + $0x8] sm:$0xff]
        %v314 = vld [vmem:[%s4 + $0x10] sm:$0xff]
        %v315 = vld [vmem:[%s4 + $0x18] sm:$0xff]
        %v316 = vld [vmem:[%s6] sm:$0xff]
        %v317 = vld [vmem:[%s298] sm:$0xf]
        %319 = vset.pattern.permute.xlu0 0
        %320 = vperm.xlu0 %319, %v308
        %v321 = vpop.permute.xlu0 %320
        %324 = vset.pattern.permute.xlu0 0
        %325 = vperm.xlu0 %324, %v309
        %v326 = vpop.permute.xlu0 %325
        %329 = vset.pattern.permute.xlu0 0
        %330 = vperm.xlu0 %329, %v310
        %v331 = vpop.permute.xlu0 %330
        %334 = vset.pattern.permute.xlu0 0
        %335 = vperm.xlu0 %334, %v311
        %v336 = vpop.permute.xlu0 %335
        %vm338 = vcmask 31744
        %v340 = vsel %vm338, %v299, 0
        %v343 = vsel %vm338, %v300, 0
        %v346 = vsel %vm338, %v301, 0
        %v349 = vsel %vm338, %v302, 0
        %vm351 = vcmask 1043456
        %v353 = vsel %vm351, %v317, 0
        %355 = vmatprep.subr.mxu0 0.0
        %356 = vmatpush1.msra.mxu0 %v353
        %357 = vmatprep.subr.mxu0 0.0
        %358 = vmatpush1.msra.mxu0 0.0
        %359 = vmatprep.subr.mxu0 0.0
        %360 = vmatpush1.msra.mxu0 0.0
        %361 = vmatprep.subr.mxu0 0.0
        %362 = vmatpush1.msra.mxu0 0.0
        %363 = vmatprep.subr.mxu0 0.0
        %364 = vmatpush1.msra.mxu0 0.0
        %365 = vmatprep.subr.mxu0 0.0
        %366 = vmatpush1.msra.mxu0 0.0
        %367 = vmatprep.subr.mxu0 0.0
        %368 = vmatpush1.msra.mxu0 0.0
        %369 = vmatprep.subr.mxu0 0.0
        %370 = vmatpush1.msra.mxu0 0.0
        %371 = vmatprep.subr.mxu0 0.0
        %372 = vmatpush1.msra.mxu0 0.0
        %373 = vmatprep.subr.mxu0 0.0
        %374 = vmatpush1.msra.mxu0 0.0
        %375 = vmatprep.subr.mxu0 0.0
        %376 = vmatpush1.msra.mxu0 0.0
        %377 = vmatprep.subr.mxu0 0.0
        %378 = vmatpush1.msra.mxu0 0.0
        %379 = vmatprep.subr.mxu0 0.0
        %380 = vmatpush1.msra.mxu0 0.0
        %381 = vmatprep.subr.mxu0 0.0
        %382 = vmatpush1.msra.mxu0 0.0
        %383 = vmatprep.subr.mxu0 0.0
        %384 = vmatpush1.msra.mxu0 0.0
        %385 = vmatprep.subr.mxu0 0.0
        %386 = vmatpush1.msra.mxu0 0.0
        %387 = vmatprep.subr.mxu0 0.0
        %388 = vmatpush1.msra.mxu0 0.0
        %389 = vmatprep.subr.mxu0 0.0
        %390 = vmatpush1.msra.mxu0 0.0
        %391 = vmatprep.subr.mxu0 0.0
        %392 = vmatpush1.msra.mxu0 0.0
        %393 = vmatprep.subr.mxu0 0.0
        %394 = vmatpush1.msra.mxu0 0.0
        %395 = vmatprep.subr.mxu0 0.0
        %396 = vmatpush1.msra.mxu0 0.0
        %397 = vmatprep.subr.mxu0 0.0
        %398 = vmatpush1.msra.mxu0 0.0
        %399 = vmatprep.subr.mxu0 0.0
        %400 = vmatpush1.msra.mxu0 0.0
        %401 = vmatprep.subr.mxu0 0.0
        %402 = vmatpush1.msra.mxu0 0.0
        %403 = vmatprep.subr.mxu0 0.0
        %404 = vmatpush1.msra.mxu0 0.0
        %405 = vmatprep.subr.mxu0 0.0
        %406 = vmatpush1.msra.mxu0 0.0
        %407 = vmatprep.subr.mxu0 0.0
        %408 = vmatpush1.msra.mxu0 0.0
        %409 = vmatprep.subr.mxu0 0.0
        %410 = vmatpush1.msra.mxu0 0.0
        %411 = vmatprep.subr.mxu0 0.0
        %412 = vmatpush1.msra.mxu0 0.0
        %413 = vmatprep.subr.mxu0 0.0
        %414 = vmatpush1.msra.mxu0 0.0
        %415 = vmatprep.subr.mxu0 0.0
        %416 = vmatpush1.msra.mxu0 0.0
        %417 = vmatprep.subr.mxu0 0.0
        %418 = vmatpush1.msra.mxu0 0.0
        %419 = vmatprep.mubr.f32.mxu0 0.0
        %420 = vmatmul.mubr.f32.gmra.mrb[0].mxu0 %v340
        %v421 = vpop.f32.mrb[0].mxu0
        %v422 = vadd.f32 %v321, %v421
        %v423 = vpop.f32.mrb[0].mxu0
        %424 = vmatprep.mubr.f32.mxu0 0.0
        %425 = vmatmul.mubr.f32.gmra.mrb[0].mxu0 %v343
        %v426 = vpop.f32.mrb[0].mxu0
        %v427 = vadd.f32 %v326, %v426
        %v428 = vpop.f32.mrb[0].mxu0
        %429 = vmatprep.mubr.f32.mxu0 0.0
        %430 = vmatmul.mubr.f32.gmra.mrb[0].mxu0 %v346
        %v431 = vpop.f32.mrb[0].mxu0
        %v432 = vadd.f32 %v331, %v431
        %v433 = vpop.f32.mrb[0].mxu0
        %434 = vmatprep.mubr.f32.mxu0 0.0
        %435 = vmatmul.mubr.f32.gmra.mrb[0].mxu0 %v349
        %v436 = vpop.f32.mrb[0].mxu0
        %v437 = vadd.f32 %v336, %v436
        %v438 = vpop.f32.mrb[0].mxu0
        %439 = vdwg.mxu0
        %v440 = vmax.f32 %v422, 0.0
        %v441 = vmax.f32 %v427, 0.0
        %v442 = vmax.f32 %v432, 0.0
        %v443 = vmax.f32 %v437, 0.0
        %445 = vset.pattern.permute.xlu0 0
        %446 = vperm.xlu0 %445, %v312
        %v447 = vpop.permute.xlu0 %446
        %450 = vset.pattern.permute.xlu0 0
        %451 = vperm.xlu0 %450, %v313
        %v452 = vpop.permute.xlu0 %451
        %455 = vset.pattern.permute.xlu0 0
        %456 = vperm.xlu0 %455, %v314
        %v457 = vpop.permute.xlu0 %456
        %460 = vset.pattern.permute.xlu0 0
        %461 = vperm.xlu0 %460, %v315
        %v462 = vpop.permute.xlu0 %461
        %vm464 = vcmask 261120
        %v466 = vsel %vm464, %v303, 0
        %v469 = vsel %vm464, %v304, 0
        %v472 = vsel %vm464, %v305, 0
        %v475 = vsel %vm464, %v306, 0
        %477 = vmatprep.subr.mxu0 0.0
        %478 = vmatpush1.msra.mxu0 %v440
        %479 = vmatprep.subr.mxu0 0.0
        %480 = vmatpush1.msra.mxu0 %v441
        %481 = vmatprep.subr.mxu0 0.0
        %482 = vmatpush1.msra.mxu0 %v442
        %483 = vmatprep.subr.mxu0 0.0
        %484 = vmatpush1.msra.mxu0 %v443
        %485 = vmatprep.subr.mxu0 0.0
        %486 = vmatpush1.msra.mxu0 0.0
        %487 = vmatprep.subr.mxu0 0.0
        %488 = vmatpush1.msra.mxu0 0.0
        %489 = vmatprep.subr.mxu0 0.0
        %490 = vmatpush1.msra.mxu0 0.0
        %491 = vmatprep.subr.mxu0 0.0
        %492 = vmatpush1.msra.mxu0 0.0
        %493 = vmatprep.subr.mxu0 0.0
        %494 = vmatpush1.msra.mxu0 0.0
        %495 = vmatprep.subr.mxu0 0.0
        %496 = vmatpush1.msra.mxu0 0.0
        %497 = vmatprep.subr.mxu0 0.0
        %498 = vmatpush1.msra.mxu0 0.0
        %499 = vmatprep.subr.mxu0 0.0
        %500 = vmatpush1.msra.mxu0 0.0
        %501 = vmatprep.subr.mxu0 0.0
        %502 = vmatpush1.msra.mxu0 0.0
        %503 = vmatprep.subr.mxu0 0.0
        %504 = vmatpush1.msra.mxu0 0.0
        %505 = vmatprep.subr.mxu0 0.0
        %506 = vmatpush1.msra.mxu0 0.0
        %507 = vmatprep.subr.mxu0 0.0
        %508 = vmatpush1.msra.mxu0 0.0
        %509 = vmatprep.subr.mxu0 0.0
        %510 = vmatpush1.msra.mxu0 0.0
        %511 = vmatprep.subr.mxu0 0.0
        %512 = vmatpush1.msra.mxu0 0.0
        %513 = vmatprep.subr.mxu0 0.0
        %514 = vmatpush1.msra.mxu0 0.0
        %515 = vmatprep.subr.mxu0 0.0
        %516 = vmatpush1.msra.mxu0 0.0
        %517 = vmatprep.subr.mxu0 0.0
        %518 = vmatpush1.msra.mxu0 0.0
        %519 = vmatprep.subr.mxu0 0.0
        %520 = vmatpush1.msra.mxu0 0.0
        %521 = vmatprep.subr.mxu0 0.0
        %522 = vmatpush1.msra.mxu0 0.0
        %523 = vmatprep.subr.mxu0 0.0
        %524 = vmatpush1.msra.mxu0 0.0
        %525 = vmatprep.subr.mxu0 0.0
        %526 = vmatpush1.msra.mxu0 0.0
        %527 = vmatprep.subr.mxu0 0.0
        %528 = vmatpush1.msra.mxu0 0.0
        %529 = vmatprep.subr.mxu0 0.0
        %530 = vmatpush1.msra.mxu0 0.0
        %531 = vmatprep.subr.mxu0 0.0
        %532 = vmatpush1.msra.mxu0 0.0
        %533 = vmatprep.subr.mxu0 0.0
        %534 = vmatpush1.msra.mxu0 0.0
        %535 = vmatprep.subr.mxu0 0.0
        %536 = vmatpush1.msra.mxu0 0.0
        %537 = vmatprep.subr.mxu0 0.0
        %538 = vmatpush1.msra.mxu0 0.0
        %539 = vmatprep.subr.mxu0 0.0
        %540 = vmatpush1.msra.mxu0 0.0
        %541 = vmatprep.mubr.f32.mxu0 0.0
        %542 = vmatmul.mubr.f32.gmra.mrb[0].mxu0 %v466
        %v543 = vpop.f32.mrb[0].mxu0
        %v544 = vadd.f32 %v447, %v543
        %v545 = vpop.f32.mrb[0].mxu0
        %546 = vmatprep.mubr.f32.mxu0 0.0
        %547 = vmatmul.mubr.f32.gmra.mrb[0].mxu0 %v469
        %v548 = vpop.f32.mrb[0].mxu0
        %v549 = vadd.f32 %v452, %v548
        %v550 = vpop.f32.mrb[0].mxu0
        %551 = vmatprep.mubr.f32.mxu0 0.0
        %552 = vmatmul.mubr.f32.gmra.mrb[0].mxu0 %v472
        %v553 = vpop.f32.mrb[0].mxu0
        %v554 = vadd.f32 %v457, %v553
        %v555 = vpop.f32.mrb[0].mxu0
        %556 = vmatprep.mubr.f32.mxu0 0.0
        %557 = vmatmul.mubr.f32.gmra.mrb[0].mxu0 %v475
        %v558 = vpop.f32.mrb[0].mxu0
        %v559 = vadd.f32 %v462, %v558
        %v560 = vpop.f32.mrb[0].mxu0
        %561 = vdwg.mxu0
        %v562 = vmax.f32 %v544, 0.0
        %v563 = vmax.f32 %v549, 0.0
        %v564 = vmax.f32 %v554, 0.0
        %v565 = vmax.f32 %v559, 0.0
        %567 = vset.pattern.permute.xlu0 0
        %568 = vperm.xlu0 %567, %v316
        %v569 = vpop.permute.xlu0 %568
        %v572 = vsel %vm464, %v307, 0
        %574 = vmatprep.subr.mxu0 0.0
        %575 = vmatpush1.msra.mxu0 %v562
        %576 = vmatprep.subr.mxu0 0.0
        %577 = vmatpush1.msra.mxu0 %v563
        %578 = vmatprep.subr.mxu0 0.0
        %579 = vmatpush1.msra.mxu0 %v564
        %580 = vmatprep.subr.mxu0 0.0
        %581 = vmatpush1.msra.mxu0 %v565
        %582 = vmatprep.subr.mxu0 0.0
        %583 = vmatpush1.msra.mxu0 0.0
        %584 = vmatprep.subr.mxu0 0.0
        %585 = vmatpush1.msra.mxu0 0.0
        %586 = vmatprep.subr.mxu0 0.0
        %587 = vmatpush1.msra.mxu0 0.0
        %588 = vmatprep.subr.mxu0 0.0
        %589 = vmatpush1.msra.mxu0 0.0
        %590 = vmatprep.subr.mxu0 0.0
        %591 = vmatpush1.msra.mxu0 0.0
        %592 = vmatprep.subr.mxu0 0.0
        %593 = vmatpush1.msra.mxu0 0.0
        %594 = vmatprep.subr.mxu0 0.0
        %595 = vmatpush1.msra.mxu0 0.0
        %596 = vmatprep.subr.mxu0 0.0
        %597 = vmatpush1.msra.mxu0 0.0
        %598 = vmatprep.subr.mxu0 0.0
        %599 = vmatpush1.msra.mxu0 0.0
        %600 = vmatprep.subr.mxu0 0.0
        %601 = vmatpush1.msra.mxu0 0.0
        %602 = vmatprep.subr.mxu0 0.0
        %603 = vmatpush1.msra.mxu0 0.0
        %604 = vmatprep.subr.mxu0 0.0
        %605 = vmatpush1.msra.mxu0 0.0
        %606 = vmatprep.subr.mxu0 0.0
        %607 = vmatpush1.msra.mxu0 0.0
        %608 = vmatprep.subr.mxu0 0.0
        %609 = vmatpush1.msra.mxu0 0.0
        %610 = vmatprep.subr.mxu0 0.0
        %611 = vmatpush1.msra.mxu0 0.0
        %612 = vmatprep.subr.mxu0 0.0
        %613 = vmatpush1.msra.mxu0 0.0
        %614 = vmatprep.subr.mxu0 0.0
        %615 = vmatpush1.msra.mxu0 0.0
        %616 = vmatprep.subr.mxu0 0.0
        %617 = vmatpush1.msra.mxu0 0.0
        %618 = vmatprep.subr.mxu0 0.0
        %619 = vmatpush1.msra.mxu0 0.0
        %620 = vmatprep.subr.mxu0 0.0
        %621 = vmatpush1.msra.mxu0 0.0
        %622 = vmatprep.subr.mxu0 0.0
        %623 = vmatpush1.msra.mxu0 0.0
        %624 = vmatprep.subr.mxu0 0.0
        %625 = vmatpush1.msra.mxu0 0.0
        %626 = vmatprep.subr.mxu0 0.0
        %627 = vmatpush1.msra.mxu0 0.0
        %628 = vmatprep.subr.mxu0 0.0
        %629 = vmatpush1.msra.mxu0 0.0
        %630 = vmatprep.subr.mxu0 0.0
        %631 = vmatpush1.msra.mxu0 0.0
        %632 = vmatprep.subr.mxu0 0.0
        %633 = vmatpush1.msra.mxu0 0.0
        %634 = vmatprep.subr.mxu0 0.0
        %635 = vmatpush1.msra.mxu0 0.0
        %636 = vmatprep.subr.mxu0 0.0
        %637 = vmatpush1.msra.mxu0 0.0
        %638 = vmatprep.mubr.f32.mxu0 0.0
        %639 = vmatmul.mubr.f32.gmra.mrb[0].mxu0 %v572
        %v640 = vpop.f32.mrb[0].mxu0
        %v641 = vadd.f32 %v569, %v640
        %v642 = vpop.f32.mrb[0].mxu0
        %643 = vdwg.mxu0
        %vm644 = vcmask 130048
        %645 = vst.msk [vmem:[%s291] sm:$0xff] %vm644, %v641
        %s646 = sand.u32 %s197, 1
        %s647 = scalar_lea.sflag [#allocation3], %s646
        %s648 = sand.u32 %s197, 1
        %s649 = smul.addr %s648, 8
        %s650 = scalar_lea.vmem [#allocation2], %s649
        // Predicated region
        $region49: #{tpu_custom_call.1} parent=47 // pred_check
          %p651 = pneg %p207
        $region50: #{tpu_custom_call.1} parent=47 // pred_check_branch
          %653 = sbr.rel (%p651) target = $region52
        $region51: #{tpu_custom_call.1} parent=47 // pred_region
          %s655 = ssub.s32 128, 128
          %656 = vsyncadd %s647, %s655
          %s657 = sadd.s32 %s26, %s25
          %s658 = smul.addr %s657, 128
          %s659 = scalar_lea.hbm %s7, %s658
          %s661 = sshll.u32 %s650, 4
          %s662 = int_to_ptr.vmem [resolvable:$true] %s661
          %664 = dma.vmem_to_hbm [thread:$0]  %s662, 128, %s659, %s647
        $region52: #{tpu_custom_call.1} parent=47 // pred_fallthru
          _
      $region48: #{tpu_custom_call.1} parent=5 // pred_fallthru
        _
      %p665 = scmp.le.s32.totalorder 2, %s16
      // Predicated region
      $region53: #{tpu_custom_call.1} parent=5 // pred_check
        %p666 = pneg %p665
      $region54: #{tpu_custom_call.1} parent=5 // pred_check_branch
        %668 = sbr.rel (%p666) target = $region56
      $region55: #{tpu_custom_call.1} parent=5 // pred_region
        %s669 = ssub.s32 %s16, 2
        // Predicated region
        $region57: #{tpu_custom_call.1} parent=55 // pred_check
          %p670 = pneg %p213
        $region58: #{tpu_custom_call.1} parent=55 // pred_check_branch
          %672 = sbr.rel (%p670) target = $region60
        $region59: #{tpu_custom_call.1} parent=55 // pred_region
          %s673 = sand.u32 %s198, 1
          %s674 = scalar_lea.sflag [#allocation3], %s673
          %s675 = sand.u32 %s198, 1
          %s676 = smul.addr %s675, 8
          %s677 = scalar_lea.vmem [#allocation2], %s676
          %678 = dma.done %s674, 128
        $region60: #{tpu_custom_call.1} parent=55 // pred_fallthru
          _
      $region56: #{tpu_custom_call.1} parent=5 // pred_fallthru
        _
    $region6: #{tpu_custom_call.1} parent=1 // loop_footer
      %s20 = sadd.s32 1, %s16
    $region7: #{tpu_custom_call.1} parent=1 // loop_footer_branch
      %15 = sbr.rel target = $region3
    $region8: #{tpu_custom_call.1} parent=1 // loop_exit
      _
    %679 = vsyncpa [#allocation3], 1
    %s680 = scalar_lea.sflag [#allocation3], 1
    %681 = vsyncpa %s680, 1

// kernel: tpu_custom_call.1
$region0: #{tpu_custom_call.1}
  #allocation0 [shape = 'u32[]', space=smem, size = 0x4, offset = 0x4, fixed_abs, tag = 'smem constant byte address 0x4 - core index']
  #allocation1 [shape = 'u32[144,128]{1,0:T(1,128)}', space=vmem, size = 0x12000, scoped, tag = 'internal scratch']
  %s0 = inlined_call_operand.vmem [shape: f32[2,4,16], index: 0, kind: input, shape index: {}]
  %s1 = inlined_call_operand.vmem [shape: f32[32,4], index: 1, kind: input, shape index: {}]
  %s2 = inlined_call_operand.vmem [shape: f32[32,1], index: 2, kind: input, shape index: {}]
  %s3 = inlined_call_operand.vmem [shape: f32[32,32], index: 3, kind: input, shape index: {}]
  %s4 = inlined_call_operand.vmem [shape: f32[32,1], index: 4, kind: input, shape index: {}]
  %s5 = inlined_call_operand.vmem [shape: f32[8,32], index: 5, kind: input, shape index: {}]
  %s6 = inlined_call_operand.vmem [shape: f32[8,1], index: 6, kind: input, shape index: {}]
  %s7 = inlined_call_operand.hbm [shape: f32[2,8,16], index: 7, kind: output, shape index: {}]
  %s8 = sld [smem:[#allocation0]]
  $region61: #{tpu_custom_call.1} parent=0
    _
  %s10 = ssub.s32 1, %s8
  %s11 = scalar_select 0, %s10, %s8
  $region1: #{tpu_custom_call.1} parent=0
    #allocation2 [shape = 'u8[8192]{0}', space=vmem, size = 0x2000, scoped, tag = 'output window, operand 0']
    #allocation3 [shape = 's32[2]{0}', space=sflag, size = 0x8, scoped, tag = 'scoped memory for tpu_custom_call.1']
    %12 = vsyncpa [#allocation3], 0
    %s13 = scalar_lea.sflag [#allocation3], 1
    %14 = vsyncpa %s13, 0
    loop: start=0, step=1, limit=4
    $region2: #{tpu_custom_call.1} parent=1 // loop_pre_header
      _
    $region3: #{tpu_custom_call.1} parent=1 // loop_header
      %s16 = sphi 0, %s20
      %p17 = scmp.ge.s32.totalorder %s16, 4
      %s23 = sphi 0, %s35
      %s24 = sphi 0, %s31
      %s25 = sphi 0, %s23
      %s26 = sphi 0, %s24
      %s27 = sphi 0, %s25
      %s28 = sphi 0, %s26
      %s40 = sphi 0, %s42
      %s43 = sphi 0, %s40
      %s44 = sphi 0, %s43
      %s60 = sphi 0, %s44
      %s64 = sphi 0, %s64
      %s66 = sphi 0, %s64
      %s67 = sphi 0, %s66
      %s81 = sphi 0, %s67
      %s85 = sphi 0, %s85
      %s87 = sphi 0, %s85
      %s88 = sphi 0, %s87
      %s102 = sphi 0, %s88
      %s106 = sphi 0, %s106
      %s108 = sphi 0, %s106
      %s109 = sphi 0, %s108
      %s123 = sphi 0, %s109
      %s127 = sphi 0, %s127
      %s129 = sphi 0, %s127
      %s130 = sphi 0, %s129
      %s144 = sphi 0, %s130
      %s148 = sphi 0, %s148
      %s150 = sphi 0, %s148
      %s151 = sphi 0, %s150
      %s165 = sphi 0, %s151
      %s169 = sphi 0, %s169
      %s171 = sphi 0, %s169
      %s172 = sphi 0, %s171
      %s186 = sphi 0, %s172
      %s194 = sphi 0, %s196
      %s197 = sphi 0, %s194
      %s198 = sphi 0, %s197
      %s214 = sphi 0, %s198
    $region4: #{tpu_custom_call.1} parent=1 // loop_header_branch
      %19 = sbr.rel (%p17) target = $region8
    $region5: #{tpu_custom_call.1} parent=1 // loop_body
      %s21 = ssub.s32 %s16, 1
      %s22 = ssub.s32 %s16, 2
      %s29 = sadd.s32 1, %s24
      %p30 = scmp.ge.s32.totalorder %s29, 1
      %s31 = scalar_select %p30, 0, %s29
      %s32 = sadd.s32 1, %s23
      %s33 = scalar_select %p30, %s32, %s23
      %p34 = scmp.ge.s32.totalorder %s33, 2
      %s35 = scalar_select %p34, 0, %s33
      %s36 = ssub.s32 %s23, %s35
      %s37 = ssub.s32 %s24, %s31
      %s38 = sor.u32 %s36, %s37
      %p39 = scmp.eq.s32.totalorder %s38, 0
      %s41 = sadd.s32 %s40, 1
      %s42 = scalar_select %p39, %s40, %s41
      %p45 = pneg %p39
      %p46 = scmp.eq.s32.totalorder %s16, 1
      %p47 = por %p45, %p46
      %p48 = scmp.ne.s32.totalorder %s40, %s43
      %p49 = scmp.eq.s32.totalorder %s16, 0
      %p50 = por %p48, %p49
      %p51 = scmp.ne.s32.totalorder %s40, %s43
      %p52 = scmp.eq.s32.totalorder %s21, 1
      %p53 = por %p51, %p52
      %p54 = scmp.ne.s32.totalorder %s43, %s44
      %p55 = scmp.eq.s32.totalorder %s21, 0
      %p56 = por %p54, %p55
      %p57 = scmp.ne.s32.totalorder %s43, %s44
      %p58 = scmp.eq.s32.totalorder %s22, 1
      %p59 = por %p57, %p58
      %p61 = scmp.ne.s32.totalorder %s44, %s60
      %p62 = scmp.eq.s32.totalorder %s22, 0
      %p63 = por %p61, %p62
      %s65 = sadd.s32 %s64, 1
      %p68 = scmp.eq.s32.totalorder %s16, 1
      %p69 = scmp.ne.s32.totalorder %s64, %s66
      %p70 = scmp.eq.s32.totalorder %s16, 0
      %p71 = por %p69, %p70
      %p72 = scmp.ne.s32.totalorder %s64, %s66
      %p73 = scmp.eq.s32.totalorder %s21, 1
      %p74 = por %p72, %p73
      %p75 = scmp.ne.s32.totalorder %s66, %s67
      %p76 = scmp.eq.s32.totalorder %s21, 0
      %p77 = por %p75, %p76
      %p78 = scmp.ne.s32.totalorder %s66, %s67
      %p79 = scmp.eq.s32.totalorder %s22, 1
      %p80 = por %p78, %p79
      %p82 = scmp.ne.s32.totalorder %s67, %s81
      %p83 = scmp.eq.s32.totalorder %s22, 0
      %p84 = por %p82, %p83
      %s86 = sadd.s32 %s85, 1
      %p89 = scmp.eq.s32.totalorder %s16, 1
      %p90 = scmp.ne.s32.totalorder %s85, %s87
      %p91 = scmp.eq.s32.totalorder %s16, 0
      %p92 = por %p90, %p91
      %p93 = scmp.ne.s32.totalorder %s85, %s87
      %p94 = scmp.eq.s32.totalorder %s21, 1
      %p95 = por %p93, %p94
      %p96 = scmp.ne.s32.totalorder %s87, %s88
      %p97 = scmp.eq.s32.totalorder %s21, 0
      %p98 = por %p96, %p97
      %p99 = scmp.ne.s32.totalorder %s87, %s88
      %p100 = scmp.eq.s32.totalorder %s22, 1
      %p101 = por %p99, %p100
      %p103 = scmp.ne.s32.totalorder %s88, %s102
      %p104 = scmp.eq.s32.totalorder %s22, 0
      %p105 = por %p103, %p104
      %s107 = sadd.s32 %s106, 1
      %p110 = scmp.eq.s32.totalorder %s16, 1
      %p111 = scmp.ne.s32.totalorder %s106, %s108
      %p112 = scmp.eq.s32.totalorder %s16, 0
      %p113 = por %p111, %p112
      %p114 = scmp.ne.s32.totalorder %s106, %s108
      %p115 = scmp.eq.s32.totalorder %s21, 1
      %p116 = por %p114, %p115
      %p117 = scmp.ne.s32.totalorder %s108, %s109
      %p118 = scmp.eq.s32.totalorder %s21, 0
      %p119 = por %p117, %p118
      %p120 = scmp.ne.s32.totalorder %s108, %s109
      %p121 = scmp.eq.s32.totalorder %s22, 1
      %p122 = por %p120, %p121
      %p124 = scmp.ne.s32.totalorder %s109, %s123
      %p125 = scmp.eq.s32.totalorder %s22, 0
      %p126 = por %p124, %p125
      %s128 = sadd.s32 %s127, 1
      %p131 = scmp.eq.s32.totalorder %s16, 1
      %p132 = scmp.ne.s32.totalorder %s127, %s129
      %p133 = scmp.eq.s32.totalorder %s16, 0
      %p134 = por %p132, %p133
      %p135 = scmp.ne.s32.totalorder %s127, %s129
      %p136 = scmp.eq.s32.totalorder %s21, 1
      %p137 = por %p135, %p136
      %p138 = scmp.ne.s32.totalorder %s129, %s130
      %p139 = scmp.eq.s32.totalorder %s21, 0
      %p140 = por %p138, %p139
      %p141 = scmp.ne.s32.totalorder %s129, %s130
      %p142 = scmp.eq.s32.totalorder %s22, 1
      %p143 = por %p141, %p142
      %p145 = scmp.ne.s32.totalorder %s130, %s144
      %p146 = scmp.eq.s32.totalorder %s22, 0
      %p147 = por %p145, %p146
      %s149 = sadd.s32 %s148, 1
      %p152 = scmp.eq.s32.totalorder %s16, 1
      %p153 = scmp.ne.s32.totalorder %s148, %s150
      %p154 = scmp.eq.s32.totalorder %s16, 0
      %p155 = por %p153, %p154
      %p156 = scmp.ne.s32.totalorder %s148, %s150
      %p157 = scmp.eq.s32.totalorder %s21, 1
      %p158 = por %p156, %p157
      %p159 = scmp.ne.s32.totalorder %s150, %s151
      %p160 = scmp.eq.s32.totalorder %s21, 0
      %p161 = por %p159, %p160
      %p162 = scmp.ne.s32.totalorder %s150, %s151
      %p163 = scmp.eq.s32.totalorder %s22, 1
      %p164 = por %p162, %p163
      %p166 = scmp.ne.s32.totalorder %s151, %s165
      %p167 = scmp.eq.s32.totalorder %s22, 0
      %p168 = por %p166, %p167
      %s170 = sadd.s32 %s169, 1
      %p173 = scmp.eq.s32.totalorder %s16, 1
      %p174 = scmp.ne.s32.totalorder %s169, %s171
      %p175 = scmp.eq.s32.totalorder %s16, 0
      %p176 = por %p174, %p175
      %p177 = scmp.ne.s32.totalorder %s169, %s171
      %p178 = scmp.eq.s32.totalorder %s21, 1
      %p179 = por %p177, %p178
      %p180 = scmp.ne.s32.totalorder %s171, %s172
      %p181 = scmp.eq.s32.totalorder %s21, 0
      %p182 = por %p180, %p181
      %p183 = scmp.ne.s32.totalorder %s171, %s172
      %p184 = scmp.eq.s32.totalorder %s22, 1
      %p185 = por %p183, %p184
      %p187 = scmp.ne.s32.totalorder %s172, %s186
      %p188 = scmp.eq.s32.totalorder %s22, 0
      %p189 = por %p187, %p188
      %s190 = ssub.s32 %s23, %s35
      %s191 = ssub.s32 %s24, %s31
      %s192 = sor.u32 %s190, %s191
      %p193 = scmp.eq.s32.totalorder %s192, 0
      %s195 = sadd.s32 %s194, 1
      %s196 = scalar_select %p193, %s194, %s195
      %p199 = pneg %p193
      %p200 = scmp.eq.s32.totalorder %s16, 1
      %p201 = por %p199, %p200
      %p202 = scmp.ne.s32.totalorder %s194, %s197
      %p203 = scmp.eq.s32.totalorder %s16, 0
      %p204 = por %p202, %p203
      %p205 = scmp.ne.s32.totalorder %s194, %s197
      %p206 = scmp.eq.s32.totalorder %s21, 1
      %p207 = por %p205, %p206
      %p208 = scmp.ne.s32.totalorder %s197, %s198
      %p209 = scmp.eq.s32.totalorder %s21, 0
      %p210 = por %p208, %p209
      %p211 = scmp.ne.s32.totalorder %s197, %s198
      %p212 = scmp.eq.s32.totalorder %s22, 1
      %p213 = por %p211, %p212
      %p215 = scmp.ne.s32.totalorder %s198, %s214
      %p216 = scmp.eq.s32.totalorder %s22, 0
      %p217 = por %p215, %p216
      %p218 = scmp.le.s32.totalorder 1, %s16
      %p219 = scmp.lt.s32.totalorder %s16, 3
      %p220 = pnand %p218, %p219
      %p221 = pneg %p220
      // Predicated region
      $region9: #{tpu_custom_call.1} parent=5 // pred_check
        _
      $region10: #{tpu_custom_call.1} parent=5 // pred_check_branch
        %223 = sbr.rel (%p220) target = $region12
      $region11: #{tpu_custom_call.1} parent=5 // pred_region
        %s224 = ssub.s32 %s16, 1
        // Predicated region
        $region13: #{tpu_custom_call.1} parent=11 // pred_check
          %p225 = pneg %p77
        $region14: #{tpu_custom_call.1} parent=11 // pred_check_branch
          %227 = sbr.rel (%p225) target = $region16
        $region15: #{tpu_custom_call.1} parent=11 // pred_region
          _
        $region16: #{tpu_custom_call.1} parent=11 // pred_fallthru
          _
        // Predicated region
        $region17: #{tpu_custom_call.1} parent=11 // pred_check
          %p228 = pneg %p98
        $region18: #{tpu_custom_call.1} parent=11 // pred_check_branch
          %230 = sbr.rel (%p228) target = $region20
        $region19: #{tpu_custom_call.1} parent=11 // pred_region
          _
        $region20: #{tpu_custom_call.1} parent=11 // pred_fallthru
          _
        // Predicated region
        $region21: #{tpu_custom_call.1} parent=11 // pred_check
          %p231 = pneg %p119
        $region22: #{tpu_custom_call.1} parent=11 // pred_check_branch
          %233 = sbr.rel (%p231) target = $region24
        $region23: #{tpu_custom_call.1} parent=11 // pred_region
          _
        $region24: #{tpu_custom_call.1} parent=11 // pred_fallthru
          _
        // Predicated region
        $region25: #{tpu_custom_call.1} parent=11 // pred_check
          %p234 = pneg %p140
        $region26: #{tpu_custom_call.1} parent=11 // pred_check_branch
          %236 = sbr.rel (%p234) target = $region28
        $region27: #{tpu_custom_call.1} parent=11 // pred_region
          _
        $region28: #{tpu_custom_call.1} parent=11 // pred_fallthru
          _
        // Predicated region
        $region29: #{tpu_custom_call.1} parent=11 // pred_check
          %p237 = pneg %p161
        $region30: #{tpu_custom_call.1} parent=11 // pred_check_branch
          %239 = sbr.rel (%p237) target = $region32
        $region31: #{tpu_custom_call.1} parent=11 // pred_region
          _
        $region32: #{tpu_custom_call.1} parent=11 // pred_fallthru
          _
        // Predicated region
        $region33: #{tpu_custom_call.1} parent=11 // pred_check
          %p240 = pneg %p182
        $region34: #{tpu_custom_call.1} parent=11 // pred_check_branch
          %242 = sbr.rel (%p240) target = $region36
        $region35: #{tpu_custom_call.1} parent=11 // pred_region
          _
        $region36: #{tpu_custom_call.1} parent=11 // pred_fallthru
          _
      $region12: #{tpu_custom_call.1} parent=5 // pred_fallthru
        _
      %p243 = scmp.lt.s32.totalorder %s16, 2
      // Predicated region
      $region37: #{tpu_custom_call.1} parent=5 // pred_check
        %p244 = pneg %p243
      $region38: #{tpu_custom_call.1} parent=5 // pred_check_branch
        %246 = sbr.rel (%p244) target = $region40
      $region39: #{tpu_custom_call.1} parent=5 // pred_region
        // Predicated region
        $region41: #{tpu_custom_call.1} parent=39 // pred_check
          %p247 = pneg %p50
        $region42: #{tpu_custom_call.1} parent=39 // pred_check_branch
          %249 = sbr.rel (%p247) target = $region44
        $region43: #{tpu_custom_call.1} parent=39 // pred_region
          %p250 = scmp.lt.s32.totalorder %s23, 1
          %s251 = scalar_select %p250, %s23, 1
          %p252 = scmp.lt.s32.totalorder %s24, 0
          %s253 = scalar_select %p252, %s24, 0
          %s254 = sadd.s32 %s253, %s251
          %s255 = smul.addr %s254, 4
          %s256 = scalar_lea.vmem %s0, %s255
        $region44: #{tpu_custom_call.1} parent=39 // pred_fallthru
          _
      $region40: #{tpu_custom_call.1} parent=5 // pred_fallthru
        _
      %p257 = scmp.le.s32.totalorder 1, %s16
      %p258 = scmp.lt.s32.totalorder %s16, 3
      %p259 = pnand %p257, %p258
      %p260 = pneg %p259
      // Predicated region
      $region45: #{tpu_custom_call.1} parent=5 // pred_check
        _
      $region46: #{tpu_custom_call.1} parent=5 // pred_check_branch
        %262 = sbr.rel (%p259) target = $region48
      $region47: #{tpu_custom_call.1} parent=5 // pred_region
        %s263 = ssub.s32 %s16, 1
        %p264 = scmp.lt.s32.totalorder %s25, 1
        %s265 = scalar_select %p264, %s25, 1
        %p266 = scmp.lt.s32.totalorder %s26, 0
        %s267 = scalar_select %p266, %s26, 0
        %s268 = sadd.s32 %s267, %s265
        %s269 = smul.addr %s268, 4
        %s270 = scalar_lea.vmem %s0, %s269
        %p271 = pneg %p56
        %p272 = pneg %p53
        %p273 = pneg %p77
        %p274 = pneg %p74
        %p275 = pneg %p98
        %p276 = pneg %p95
        %p277 = pneg %p119
        %p278 = pneg %p116
        %p279 = pneg %p140
        %p280 = pneg %p137
        %p281 = pneg %p161
        %p282 = pneg %p158
        %p283 = pneg %p182
        %p284 = pneg %p179
        %p285 = pneg %p210
        %p286 = pneg %p207
        %s287 = sand.u32 %s197, 1
        %s288 = scalar_lea.sflag [#allocation3], %s287
        %s289 = sand.u32 %s197, 1
        %s290 = smul.addr %s289, 8
        %s291 = scalar_lea.vmem [#allocation2], %s290
        %p292 = scmp.lt.s32.totalorder %s25, 1
        %s293 = scalar_select %p292, %s25, 1
        %p294 = scmp.lt.s32.totalorder %s26, 0
        %s295 = scalar_select %p294, %s26, 0
        %s296 = sadd.s32 %s295, %s293
        %s297 = smul.addr %s296, 4
        %s298 = scalar_lea.vmem %s0, %s297
        %v299 = vld [vmem:[%s1] sm:$0xff]
        %v300 = vld [vmem:[%s1 + $0x8] sm:$0xff]
        %v301 = vld [vmem:[%s1 + $0x10] sm:$0xff]
        %v302 = vld [vmem:[%s1 + $0x18] sm:$0xff]
        %v303 = vld [vmem:[%s3] sm:$0xff]
        %v304 = vld [vmem:[%s3 + $0x8] sm:$0xff]
        %v305 = vld [vmem:[%s3 + $0x10] sm:$0xff]
        %v306 = vld [vmem:[%s3 + $0x18] sm:$0xff]
        %v307 = vld [vmem:[%s5] sm:$0xff]
        %v308 = vld [vmem:[%s2] sm:$0xff]
        %v309 = vld [vmem:[%s2 + $0x8] sm:$0xff]
        %v310 = vld [vmem:[%s2 + $0x10] sm:$0xff]
        %v311 = vld [vmem:[%s2 + $0x18] sm:$0xff]
        %v312 = vld [vmem:[%s4] sm:$0xff]
        %v313 = vld [vmem:[%s4 + $0x8] sm:$0xff]
        %v314 = vld [vmem:[%s4 + $0x10] sm:$0xff]
        %v315 = vld [vmem:[%s4 + $0x18] sm:$0xff]
        %v316 = vld [vmem:[%s6] sm:$0xff]
        %v317 = vld [vmem:[%s298] sm:$0xf]
        %319 = vset.pattern.permute.xlu0 0
        %320 = vperm.xlu0 %319, %v308
        %v321 = vpop.permute.xlu0 %320
        %324 = vset.pattern.permute.xlu0 0
        %325 = vperm.xlu0 %324, %v309
        %v326 = vpop.permute.xlu0 %325
        %329 = vset.pattern.permute.xlu0 0
        %330 = vperm.xlu0 %329, %v310
        %v331 = vpop.permute.xlu0 %330
        %334 = vset.pattern.permute.xlu0 0
        %335 = vperm.xlu0 %334, %v311
        %v336 = vpop.permute.xlu0 %335
        %vm338 = vcmask 31744
        %v340 = vsel %vm338, %v299, 0
        %v343 = vsel %vm338, %v300, 0
        %v346 = vsel %vm338, %v301, 0
        %v349 = vsel %vm338, %v302, 0
        %vm351 = vcmask 1043456
        %v353 = vsel %vm351, %v317, 0
        %355 = vmatprep.subr.mxu0 0.0
        %356 = vmatpush1.msra.mxu0 %v353
        %357 = vmatprep.subr.mxu0 0.0
        %358 = vmatpush1.msra.mxu0 0.0
        %359 = vmatprep.subr.mxu0 0.0
        %360 = vmatpush1.msra.mxu0 0.0
        %361 = vmatprep.subr.mxu0 0.0
        %362 = vmatpush1.msra.mxu0 0.0
        %363 = vmatprep.subr.mxu0 0.0
        %364 = vmatpush1.msra.mxu0 0.0
        %365 = vmatprep.subr.mxu0 0.0
        %366 = vmatpush1.msra.mxu0 0.0
        %367 = vmatprep.subr.mxu0 0.0
        %368 = vmatpush1.msra.mxu0 0.0
        %369 = vmatprep.subr.mxu0 0.0
        %370 = vmatpush1.msra.mxu0 0.0
        %371 = vmatprep.subr.mxu0 0.0
        %372 = vmatpush1.msra.mxu0 0.0
        %373 = vmatprep.subr.mxu0 0.0
        %374 = vmatpush1.msra.mxu0 0.0
        %375 = vmatprep.subr.mxu0 0.0
        %376 = vmatpush1.msra.mxu0 0.0
        %377 = vmatprep.subr.mxu0 0.0
        %378 = vmatpush1.msra.mxu0 0.0
        %379 = vmatprep.subr.mxu0 0.0
        %380 = vmatpush1.msra.mxu0 0.0
        %381 = vmatprep.subr.mxu0 0.0
        %382 = vmatpush1.msra.mxu0 0.0
        %383 = vmatprep.subr.mxu0 0.0
        %384 = vmatpush1.msra.mxu0 0.0
        %385 = vmatprep.subr.mxu0 0.0
        %386 = vmatpush1.msra.mxu0 0.0
        %387 = vmatprep.subr.mxu0 0.0
        %388 = vmatpush1.msra.mxu0 0.0
        %389 = vmatprep.subr.mxu0 0.0
        %390 = vmatpush1.msra.mxu0 0.0
        %391 = vmatprep.subr.mxu0 0.0
        %392 = vmatpush1.msra.mxu0 0.0
        %393 = vmatprep.subr.mxu0 0.0
        %394 = vmatpush1.msra.mxu0 0.0
        %395 = vmatprep.subr.mxu0 0.0
        %396 = vmatpush1.msra.mxu0 0.0
        %397 = vmatprep.subr.mxu0 0.0
        %398 = vmatpush1.msra.mxu0 0.0
        %399 = vmatprep.subr.mxu0 0.0
        %400 = vmatpush1.msra.mxu0 0.0
        %401 = vmatprep.subr.mxu0 0.0
        %402 = vmatpush1.msra.mxu0 0.0
        %403 = vmatprep.subr.mxu0 0.0
        %404 = vmatpush1.msra.mxu0 0.0
        %405 = vmatprep.subr.mxu0 0.0
        %406 = vmatpush1.msra.mxu0 0.0
        %407 = vmatprep.subr.mxu0 0.0
        %408 = vmatpush1.msra.mxu0 0.0
        %409 = vmatprep.subr.mxu0 0.0
        %410 = vmatpush1.msra.mxu0 0.0
        %411 = vmatprep.subr.mxu0 0.0
        %412 = vmatpush1.msra.mxu0 0.0
        %413 = vmatprep.subr.mxu0 0.0
        %414 = vmatpush1.msra.mxu0 0.0
        %415 = vmatprep.subr.mxu0 0.0
        %416 = vmatpush1.msra.mxu0 0.0
        %417 = vmatprep.subr.mxu0 0.0
        %418 = vmatpush1.msra.mxu0 0.0
        %419 = vmatprep.mubr.f32.mxu0 0.0
        %420 = vmatmul.mubr.f32.gmra.mrb[0].mxu0 %v340
        %v421 = vpop.f32.mrb[0].mxu0
        %v422 = vadd.f32 %v321, %v421
        %v423 = vpop.f32.mrb[0].mxu0
        %424 = vmatprep.mubr.f32.mxu0 0.0
        %425 = vmatmul.mubr.f32.gmra.mrb[0].mxu0 %v343
        %v426 = vpop.f32.mrb[0].mxu0
        %v427 = vadd.f32 %v326, %v426
        %v428 = vpop.f32.mrb[0].mxu0
        %429 = vmatprep.mubr.f32.mxu0 0.0
        %430 = vmatmul.mubr.f32.gmra.mrb[0].mxu0 %v346
        %v431 = vpop.f32.mrb[0].mxu0
        %v432 = vadd.f32 %v331, %v431
        %v433 = vpop.f32.mrb[0].mxu0
        %434 = vmatprep.mubr.f32.mxu0 0.0
        %435 = vmatmul.mubr.f32.gmra.mrb[0].mxu0 %v349
        %v436 = vpop.f32.mrb[0].mxu0
        %v437 = vadd.f32 %v336, %v436
        %v438 = vpop.f32.mrb[0].mxu0
        %439 = vdwg.mxu0
        %v440 = vmax.f32 %v422, 0.0
        %v441 = vmax.f32 %v427, 0.0
        %v442 = vmax.f32 %v432, 0.0
        %v443 = vmax.f32 %v437, 0.0
        %445 = vset.pattern.permute.xlu0 0
        %446 = vperm.xlu0 %445, %v312
        %v447 = vpop.permute.xlu0 %446
        %450 = vset.pattern.permute.xlu0 0
        %451 = vperm.xlu0 %450, %v313
        %v452 = vpop.permute.xlu0 %451
        %455 = vset.pattern.permute.xlu0 0
        %456 = vperm.xlu0 %455, %v314
        %v457 = vpop.permute.xlu0 %456
        %460 = vset.pattern.permute.xlu0 0
        %461 = vperm.xlu0 %460, %v315
        %v462 = vpop.permute.xlu0 %461
        %vm464 = vcmask 261120
        %v466 = vsel %vm464, %v303, 0
        %v469 = vsel %vm464, %v304, 0
        %v472 = vsel %vm464, %v305, 0
        %v475 = vsel %vm464, %v306, 0
        %477 = vmatprep.subr.mxu0 0.0
        %478 = vmatpush1.msra.mxu0 %v440
        %479 = vmatprep.subr.mxu0 0.0
        %480 = vmatpush1.msra.mxu0 %v441
        %481 = vmatprep.subr.mxu0 0.0
        %482 = vmatpush1.msra.mxu0 %v442
        %483 = vmatprep.subr.mxu0 0.0
        %484 = vmatpush1.msra.mxu0 %v443
        %485 = vmatprep.subr.mxu0 0.0
        %486 = vmatpush1.msra.mxu0 0.0
        %487 = vmatprep.subr.mxu0 0.0
        %488 = vmatpush1.msra.mxu0 0.0
        %489 = vmatprep.subr.mxu0 0.0
        %490 = vmatpush1.msra.mxu0 0.0
        %491 = vmatprep.subr.mxu0 0.0
        %492 = vmatpush1.msra.mxu0 0.0
        %493 = vmatprep.subr.mxu0 0.0
        %494 = vmatpush1.msra.mxu0 0.0
        %495 = vmatprep.subr.mxu0 0.0
        %496 = vmatpush1.msra.mxu0 0.0
        %497 = vmatprep.subr.mxu0 0.0
        %498 = vmatpush1.msra.mxu0 0.0
        %499 = vmatprep.subr.mxu0 0.0
        %500 = vmatpush1.msra.mxu0 0.0
        %501 = vmatprep.subr.mxu0 0.0
        %502 = vmatpush1.msra.mxu0 0.0
        %503 = vmatprep.subr.mxu0 0.0
        %504 = vmatpush1.msra.mxu0 0.0
        %505 = vmatprep.subr.mxu0 0.0
        %506 = vmatpush1.msra.mxu0 0.0
        %507 = vmatprep.subr.mxu0 0.0
        %508 = vmatpush1.msra.mxu0 0.0
        %509 = vmatprep.subr.mxu0 0.0
        %510 = vmatpush1.msra.mxu0 0.0
        %511 = vmatprep.subr.mxu0 0.0
        %512 = vmatpush1.msra.mxu0 0.0
        %513 = vmatprep.subr.mxu0 0.0
        %514 = vmatpush1.msra.mxu0 0.0
        %515 = vmatprep.subr.mxu0 0.0
        %516 = vmatpush1.msra.mxu0 0.0
        %517 = vmatprep.subr.mxu0 0.0
        %518 = vmatpush1.msra.mxu0 0.0
        %519 = vmatprep.subr.mxu0 0.0
        %520 = vmatpush1.msra.mxu0 0.0
        %521 = vmatprep.subr.mxu0 0.0
        %522 = vmatpush1.msra.mxu0 0.0
        %523 = vmatprep.subr.mxu0 0.0
        %524 = vmatpush1.msra.mxu0 0.0
        %525 = vmatprep.subr.mxu0 0.0
        %526 = vmatpush1.msra.mxu0 0.0
        %527 = vmatprep.subr.mxu0 0.0
        %528 = vmatpush1.msra.mxu0 0.0
        %529 = vmatprep.subr.mxu0 0.0
        %530 = vmatpush1.msra.mxu0 0.0
        %531 = vmatprep.subr.mxu0 0.0
        %532 = vmatpush1.msra.mxu0 0.0
        %533 = vmatprep.subr.mxu0 0.0
        %534 = vmatpush1.msra.mxu0 0.0
        %535 = vmatprep.subr.mxu0 0.0
        %536 = vmatpush1.msra.mxu0 0.0
        %537 = vmatprep.subr.mxu0 0.0
        %538 = vmatpush1.msra.mxu0 0.0
        %539 = vmatprep.subr.mxu0 0.0
        %540 = vmatpush1.msra.mxu0 0.0
        %541 = vmatprep.mubr.f32.mxu0 0.0
        %542 = vmatmul.mubr.f32.gmra.mrb[0].mxu0 %v466
        %v543 = vpop.f32.mrb[0].mxu0
        %v544 = vadd.f32 %v447, %v543
        %v545 = vpop.f32.mrb[0].mxu0
        %546 = vmatprep.mubr.f32.mxu0 0.0
        %547 = vmatmul.mubr.f32.gmra.mrb[0].mxu0 %v469
        %v548 = vpop.f32.mrb[0].mxu0
        %v549 = vadd.f32 %v452, %v548
        %v550 = vpop.f32.mrb[0].mxu0
        %551 = vmatprep.mubr.f32.mxu0 0.0
        %552 = vmatmul.mubr.f32.gmra.mrb[0].mxu0 %v472
        %v553 = vpop.f32.mrb[0].mxu0
        %v554 = vadd.f32 %v457, %v553
        %v555 = vpop.f32.mrb[0].mxu0
        %556 = vmatprep.mubr.f32.mxu0 0.0
        %557 = vmatmul.mubr.f32.gmra.mrb[0].mxu0 %v475
        %v558 = vpop.f32.mrb[0].mxu0
        %v559 = vadd.f32 %v462, %v558
        %v560 = vpop.f32.mrb[0].mxu0
        %561 = vdwg.mxu0
        %v562 = vmax.f32 %v544, 0.0
        %v563 = vmax.f32 %v549, 0.0
        %v564 = vmax.f32 %v554, 0.0
        %v565 = vmax.f32 %v559, 0.0
        %567 = vset.pattern.permute.xlu0 0
        %568 = vperm.xlu0 %567, %v316
        %v569 = vpop.permute.xlu0 %568
        %v572 = vsel %vm464, %v307, 0
        %574 = vmatprep.subr.mxu0 0.0
        %575 = vmatpush1.msra.mxu0 %v562
        %576 = vmatprep.subr.mxu0 0.0
        %577 = vmatpush1.msra.mxu0 %v563
        %578 = vmatprep.subr.mxu0 0.0
        %579 = vmatpush1.msra.mxu0 %v564
        %580 = vmatprep.subr.mxu0 0.0
        %581 = vmatpush1.msra.mxu0 %v565
        %582 = vmatprep.subr.mxu0 0.0
        %583 = vmatpush1.msra.mxu0 0.0
        %584 = vmatprep.subr.mxu0 0.0
        %585 = vmatpush1.msra.mxu0 0.0
        %586 = vmatprep.subr.mxu0 0.0
        %587 = vmatpush1.msra.mxu0 0.0
        %588 = vmatprep.subr.mxu0 0.0
        %589 = vmatpush1.msra.mxu0 0.0
        %590 = vmatprep.subr.mxu0 0.0
        %591 = vmatpush1.msra.mxu0 0.0
        %592 = vmatprep.subr.mxu0 0.0
        %593 = vmatpush1.msra.mxu0 0.0
        %594 = vmatprep.subr.mxu0 0.0
        %595 = vmatpush1.msra.mxu0 0.0
        %596 = vmatprep.subr.mxu0 0.0
        %597 = vmatpush1.msra.mxu0 0.0
        %598 = vmatprep.subr.mxu0 0.0
        %599 = vmatpush1.msra.mxu0 0.0
        %600 = vmatprep.subr.mxu0 0.0
        %601 = vmatpush1.msra.mxu0 0.0
        %602 = vmatprep.subr.mxu0 0.0
        %603 = vmatpush1.msra.mxu0 0.0
        %604 = vmatprep.subr.mxu0 0.0
        %605 = vmatpush1.msra.mxu0 0.0
        %606 = vmatprep.subr.mxu0 0.0
        %607 = vmatpush1.msra.mxu0 0.0
        %608 = vmatprep.subr.mxu0 0.0
        %609 = vmatpush1.msra.mxu0 0.0
        %610 = vmatprep.subr.mxu0 0.0
        %611 = vmatpush1.msra.mxu0 0.0
        %612 = vmatprep.subr.mxu0 0.0
        %613 = vmatpush1.msra.mxu0 0.0
        %614 = vmatprep.subr.mxu0 0.0
        %615 = vmatpush1.msra.mxu0 0.0
        %616 = vmatprep.subr.mxu0 0.0
        %617 = vmatpush1.msra.mxu0 0.0
        %618 = vmatprep.subr.mxu0 0.0
        %619 = vmatpush1.msra.mxu0 0.0
        %620 = vmatprep.subr.mxu0 0.0
        %621 = vmatpush1.msra.mxu0 0.0
        %622 = vmatprep.subr.mxu0 0.0
        %623 = vmatpush1.msra.mxu0 0.0
        %624 = vmatprep.subr.mxu0 0.0
        %625 = vmatpush1.msra.mxu0 0.0
        %626 = vmatprep.subr.mxu0 0.0
        %627 = vmatpush1.msra.mxu0 0.0
        %628 = vmatprep.subr.mxu0 0.0
        %629 = vmatpush1.msra.mxu0 0.0
        %630 = vmatprep.subr.mxu0 0.0
        %631 = vmatpush1.msra.mxu0 0.0
        %632 = vmatprep.subr.mxu0 0.0
        %633 = vmatpush1.msra.mxu0 0.0
        %634 = vmatprep.subr.mxu0 0.0
        %635 = vmatpush1.msra.mxu0 0.0
        %636 = vmatprep.subr.mxu0 0.0
        %637 = vmatpush1.msra.mxu0 0.0
        %638 = vmatprep.mubr.f32.mxu0 0.0
        %639 = vmatmul.mubr.f32.gmra.mrb[0].mxu0 %v572
        %v640 = vpop.f32.mrb[0].mxu0
        %v641 = vadd.f32 %v569, %v640
        %v642 = vpop.f32.mrb[0].mxu0
        %643 = vdwg.mxu0
        %vm644 = vcmask 130048
        %645 = vst.msk [vmem:[%s291] sm:$0xff] %vm644, %v641
        %s646 = sand.u32 %s197, 1
        %s647 = scalar_lea.sflag [#allocation3], %s646
        %s648 = sand.u32 %s197, 1
        %s649 = smul.addr %s648, 8
        %s650 = scalar_lea.vmem [#allocation2], %s649
        // Predicated region
        $region49: #{tpu_custom_call.1} parent=47 // pred_check
          %p651 = pneg %p207
        $region50: #{tpu_custom_call.1} parent=47 // pred_check_branch
          %653 = sbr.rel (%p651) target = $region52
        $region51: #{tpu_custom_call.1} parent=47 // pred_region
          %s655 = ssub.s32 128, 128
          %656 = vsyncadd %s647, %s655
          %s657 = sadd.s32 %s26, %s25
          %s658 = smul.addr %s657, 128
          %s659 = scalar_lea.hbm %s7, %s658
          %s661 = sshll.u32 %s650, 4
          %s662 = int_to_ptr.vmem [resolvable:$true] %s661
          %664 = dma.vmem_to_hbm [thread:$0]  %s662, 128, %s659, %s647
        $region52: #{tpu_custom_call.1} parent=47 // pred_fallthru
          _
      $region48: #{tpu_custom_call.1} parent=5 // pred_fallthru
        _
      %p665 = scmp.le.s32.totalorder 2, %s16
      // Predicated region
      $region53: #{tpu_custom_call.1} parent=5 // pred_check
        %p666 = pneg %p665
      $region54: #{tpu_custom_call.1} parent=5 // pred_check_branch
        %668 = sbr.rel (%p666) target = $region56
      $region55: #{tpu_custom_call.1} parent=5 // pred_region
        %s669 = ssub.s32 %s16, 2
        // Predicated region
        $region57: #{tpu_custom_call.1} parent=55 // pred_check
          %p670 = pneg %p213
        $region58: #{tpu_custom_call.1} parent=55 // pred_check_branch
          %672 = sbr.rel (%p670) target = $region60
        $region59: #{tpu_custom_call.1} parent=55 // pred_region
          %s673 = sand.u32 %s198, 1
          %s674 = scalar_lea.sflag [#allocation3], %s673
          %s675 = sand.u32 %s198, 1
          %s676 = smul.addr %s675, 8
          %s677 = scalar_lea.vmem [#allocation2], %s676
          %678 = dma.done %s674, 128
        $region60: #{tpu_custom_call.1} parent=55 // pred_fallthru
          _
      $region56: #{tpu_custom_call.1} parent=5 // pred_fallthru
        _
    $region6: #{tpu_custom_call.1} parent=1 // loop_footer
      %s20 = sadd.s32 1, %s16
    $region7: #{tpu_custom_call.1} parent=1 // loop_footer_branch
      %15 = sbr.rel target = $region3
    $region8: #{tpu_custom_call.1} parent=1 // loop_exit
      _
    %679 = vsyncpa [#allocation3], 1
    %s680 = scalar_lea.sflag [#allocation3], 1
    %681 = vsyncpa %s680, 1

</llo_original>
